<compile_context>
chip_gen: v7x
topology: tpu7x:2x2x1
jax: 0.10.0
libtpu: 0.0.40
codegen_flags: <defaults>
</compile_context>

<pallas_src>
import math
import functools

import jax
import jax.numpy as jnp
from jax import lax
from jax.experimental import pallas as pl
from jax.experimental.pallas import tpu as pltpu


_VMEM_LIMIT = 48 * 1024 * 1024   # safe on v5e/v6e (128 MiB) and v7x (64 MiB phys)


def _pick_tile(dim, target, aligns=(128, 8)):
    """Largest tile <= target that divides `dim` and is a multiple of one of
    the allowed alignments; falls back to the full dim (always BlockSpec-legal)."""
    if dim <= target:
        return dim
    for align in aligns:
        best = 0
        t = align
        while t <= target:
            if dim % t == 0:
                best = t
            t += align
        if best:
            return best
    return dim


# ---------------------------------------------------------------------------
# Tiled linear:  out = x @ w_t + b        (w_t already (K, N))
# ---------------------------------------------------------------------------
def _linear_kernel(x_ref, w_ref, b_ref, o_ref, acc_ref):
    k = pl.program_id(2)

    @pl.when(k == 0)
    def _():
        acc_ref[...] = jnp.zeros_like(acc_ref)

    acc_ref[...] += jnp.dot(x_ref[...], w_ref[...],
                            preferred_element_type=jnp.float32)

    @pl.when(k == pl.num_programs(2) - 1)
    def _():
        o_ref[...] = (acc_ref[...] + b_ref[...]).astype(o_ref.dtype)


def _linear(x2d, w_t, b, *, tm_target=256, tn_target=256, tk_target=512):
    """x2d: (M, K); w_t: (K, N); b: (N,)."""
    M, K = x2d.shape
    _, N = w_t.shape

    tm = _pick_tile(M, tm_target, aligns=(128, 8))
    tn = _pick_tile(N, tn_target, aligns=(128,))
    tk = _pick_tile(K, tk_target, aligns=(128,))

    b2 = b.reshape(1, N)
    grid = (M // tm, N // tn, K // tk)

    return pl.pallas_call(
        _linear_kernel,
        out_shape=jax.ShapeDtypeStruct((M, N), x2d.dtype),
        grid_spec=pltpu.PrefetchScalarGridSpec(
            num_scalar_prefetch=0,
            grid=grid,
            in_specs=[
                pl.BlockSpec((tm, tk), lambda i, j, k: (i, k)),   # x
                pl.BlockSpec((tk, tn), lambda i, j, k: (k, j)),   # w^T
                pl.BlockSpec((1, tn), lambda i, j, k: (0, j)),    # bias
            ],
            out_specs=pl.BlockSpec((tm, tn), lambda i, j, k: (i, j)),
            scratch_shapes=[pltpu.VMEM((tm, tn), jnp.float32)],
        ),
        compiler_params=pltpu.CompilerParams(
            dimension_semantics=("parallel", "parallel", "arbitrary"),
            vmem_limit_bytes=_VMEM_LIMIT),
    )(x2d, w_t, b2)


# ---------------------------------------------------------------------------
# Fused K/V projection: one pass over y, two MXU accumulators, two outputs.
#   k = y @ wk_t + bk ;  v = y @ wv_t + bv
# ---------------------------------------------------------------------------
def _kv_linear_kernel(y_ref, wk_ref, bk_ref, wv_ref, bv_ref,
                      ko_ref, vo_ref, acck_ref, accv_ref):
    kk = pl.program_id(2)

    @pl.when(kk == 0)
    def _():
        acck_ref[...] = jnp.zeros_like(acck_ref)
        accv_ref[...] = jnp.zeros_like(accv_ref)

    y = y_ref[...]                       # one HBM->VMEM fetch feeds both dots
    acck_ref[...] += jnp.dot(y, wk_ref[...], preferred_element_type=jnp.float32)
    accv_ref[...] += jnp.dot(y, wv_ref[...], preferred_element_type=jnp.float32)

    @pl.when(kk == pl.num_programs(2) - 1)
    def _():
        ko_ref[...] = (acck_ref[...] + bk_ref[...]).astype(ko_ref.dtype)
        vo_ref[...] = (accv_ref[...] + bv_ref[...]).astype(vo_ref.dtype)


def _kv_linear(y2d, wk_t, bk, wv_t, bv, *,
               tm_target=256, tn_target=256, tk_target=512):
    """y2d: (M, K); wk_t, wv_t: (K, N); bk, bv: (N,). Returns (k, v)."""
    M, K = y2d.shape
    _, N = wk_t.shape

    tm = _pick_tile(M, tm_target, aligns=(128, 8))
    tn = _pick_tile(N, tn_target, aligns=(128,))
    tk = _pick_tile(K, tk_target, aligns=(128,))

    bk2 = bk.reshape(1, N)
    bv2 = bv.reshape(1, N)
    grid = (M // tm, N // tn, K // tk)

    out_spec = pl.BlockSpec((tm, tn), lambda i, j, k: (i, j))

    return pl.pallas_call(
        _kv_linear_kernel,
        out_shape=(jax.ShapeDtypeStruct((M, N), y2d.dtype),
                   jax.ShapeDtypeStruct((M, N), y2d.dtype)),
        grid_spec=pltpu.PrefetchScalarGridSpec(
            num_scalar_prefetch=0,
            grid=grid,
            in_specs=[
                pl.BlockSpec((tm, tk), lambda i, j, k: (i, k)),   # y
                pl.BlockSpec((tk, tn), lambda i, j, k: (k, j)),   # wk^T
                pl.BlockSpec((1, tn), lambda i, j, k: (0, j)),    # bk
                pl.BlockSpec((tk, tn), lambda i, j, k: (k, j)),   # wv^T
                pl.BlockSpec((1, tn), lambda i, j, k: (0, j)),    # bv
            ],
            out_specs=(out_spec, out_spec),
            scratch_shapes=[pltpu.VMEM((tm, tn), jnp.float32),
                            pltpu.VMEM((tm, tn), jnp.float32)],
        ),
        compiler_params=pltpu.CompilerParams(
            dimension_semantics=("parallel", "parallel", "arbitrary"),
            vmem_limit_bytes=_VMEM_LIMIT),
    )(y2d, wk_t, bk2, wv_t, bv2)


# ---------------------------------------------------------------------------
# Flash-style cross attention over (batch*heads, q-tiles, kv-tiles)
# ---------------------------------------------------------------------------
def _flash_kernel(q_ref, k_ref, v_ref, o_ref, m_sc, l_sc, acc_sc, *, scale):
    kv = pl.program_id(2)

    @pl.when(kv == 0)
    def _():
        m_sc[...] = jnp.full_like(m_sc, -jnp.inf)
        l_sc[...] = jnp.zeros_like(l_sc)
        acc_sc[...] = jnp.zeros_like(acc_sc)

    # Fold the softmax scale into the small (tq, dh) q tile, not (tq, tkv) scores.
    q = q_ref[0] * scale          # (tq, dh)
    k = k_ref[0]                  # (tkv, dh)
    v = v_ref[0]                  # (tkv, dh)

    # QK^T: contract last dims directly on the MXU — no explicit transpose.
    s = lax.dot_general(q, k, (((1,), (1,)), ((), ())),
                        preferred_element_type=jnp.float32)      # (tq, tkv)

    m_prev = m_sc[...]
    m_new = jnp.maximum(m_prev, jnp.max(s, axis=-1, keepdims=True))
    alpha = jnp.exp(m_prev - m_new)
    p = jnp.exp(s - m_new)

    l_sc[...] = alpha * l_sc[...] + jnp.sum(p, axis=-1, keepdims=True)
    acc_sc[...] = alpha * acc_sc[...] + jnp.dot(
        p.astype(v.dtype), v, preferred_element_type=jnp.float32)
    m_sc[...] = m_new

    @pl.when(kv == pl.num_programs(2) - 1)
    def _():
        l = l_sc[...]
        r = pl.reciprocal(l, approx=True)   # EUP slot (otherwise idle)
        r = r * (2.0 - l * r)               # one Newton step -> ~f32-exact
        o_ref[0] = (acc_sc[...] * r).astype(o_ref.dtype)


def _flash_attention(q, k, v, *, tq_target=256, tkv_target=512):
    """q: (B*H, Sq, dh); k, v: (B*H, Skv, dh) -> (B*H, Sq, dh)."""
    BH, Sq, dh = q.shape
    _, Skv, _ = k.shape

    tq = _pick_tile(Sq, tq_target, aligns=(128, 8))
    tkv = _pick_tile(Skv, tkv_target, aligns=(128, 8))
    scale = 1.0 / math.sqrt(dh)

    kernel = functools.partial(_flash_kernel, scale=scale)
    grid = (BH, Sq // tq, Skv // tkv)

    return pl.pallas_call(
        kernel,
        out_shape=jax.ShapeDtypeStruct((BH, Sq, dh), q.dtype),
        grid_spec=pltpu.PrefetchScalarGridSpec(
            num_scalar_prefetch=0,
            grid=grid,
            in_specs=[
                pl.BlockSpec((1, tq, dh), lambda b, qi, ki: (b, qi, 0)),
                pl.BlockSpec((1, tkv, dh), lambda b, qi, ki: (b, ki, 0)),
                pl.BlockSpec((1, tkv, dh), lambda b, qi, ki: (b, ki, 0)),
            ],
            out_specs=pl.BlockSpec((1, tq, dh), lambda b, qi, ki: (b, qi, 0)),
            scratch_shapes=[
                pltpu.VMEM((tq, 1), jnp.float32),    # running max m
                pltpu.VMEM((tq, 1), jnp.float32),    # running denom l
                pltpu.VMEM((tq, dh), jnp.float32),   # output accumulator
            ],
        ),
        compiler_params=pltpu.CompilerParams(
            dimension_semantics=("parallel", "parallel", "arbitrary"),
            vmem_limit_bytes=_VMEM_LIMIT),
    )(q, k, v)


# ---------------------------------------------------------------------------
# Full CrossAttention forward
# ---------------------------------------------------------------------------
def cross_attention(x, y, wq, bq, wk, bk, wv, bv, wo, bo, *, n_heads):
    """x: (B, Sq, d_embed); y: (B, Skv, d_cross).
    Weights follow the PyTorch nn.Linear convention (out_features, in_features)."""
    B, Sq, D = x.shape
    _, Skv, Dc = y.shape
    dh = D // n_heads

    # Projections (tiled Pallas matmuls; weights transposed once, in the wrapper).
    q = _linear(x.reshape(B * Sq, D), jnp.transpose(wq), bq)            # (B*Sq, D)
    k, v = _kv_linear(y.reshape(B * Skv, Dc),
                      jnp.transpose(wk), bk,
                      jnp.transpose(wv), bv)                            # (B*Skv, D) x2

    # Head split: layout plumbing only (mirrors view(...).transpose(1, 2)).
    def split_heads(t, S):
        return (t.reshape(B, S, n_heads, dh)
                 .transpose(0, 2, 1, 3)
                 .reshape(B * n_heads, S, dh))

    attn = _flash_attention(split_heads(q, Sq),
                            split_heads(k, Skv),
                            split_heads(v, Skv))                        # (B*H, Sq, dh)

    attn = (attn.reshape(B, n_heads, Sq, dh)
                .transpose(0, 2, 1, 3)
                .reshape(B * Sq, D))

    out = _linear(attn, jnp.transpose(wo), bo)                          # (B*Sq, D)
    return out.reshape(B, Sq, D)


# ---------------------------------------------------------------------------
# Plain-JAX reference mirroring the PyTorch forward
# ---------------------------------------------------------------------------
def _reference(x, y, wq, bq, wk, bk, wv, bv, wo, bo, *, n_heads):
    B, Sq, D = x.shape
    dh = D // n_heads
    q = x @ wq.T + bq
    k = y @ wk.T + bk
    v = y @ wv.T + bv
    q = q.reshape(B, Sq, n_heads, dh).transpose(0, 2, 1, 3)
    k = k.reshape(B, -1, n_heads, dh).transpose(0, 2, 1, 3)
    v = v.reshape(B, -1, n_heads, dh).transpose(0, 2, 1, 3)
    w = (q @ jnp.swapaxes(k, -1, -2)) / math.sqrt(dh)
    w = jax.nn.softmax(w, axis=-1)
    out = (w @ v).transpose(0, 2, 1, 3).reshape(B, Sq, D)
    return out @ wo.T + bo


if __name__ == "__main__":
    B, Sq, Skv = 2, 8, 16
    D, Dc = 32, 64          # d_embed, d_cross
    n_heads = 4

    key = jax.random.PRNGKey(0)
    kx, ky, k1, k2, k3, k4, k5, k6, k7, k8 = jax.random.split(key, 10)

    x = jax.random.normal(kx, (B, Sq, D), dtype=jnp.float32)
    y = jax.random.normal(ky, (B, Skv, Dc), dtype=jnp.float32)

    # nn.Linear-shaped parameters: weight (out, in), bias (out,)
    wq = jax.random.normal(k1, (D, D), dtype=jnp.float32) * 0.05
    bq = jax.random.normal(k2, (D,), dtype=jnp.float32) * 0.05
    wk = jax.random.normal(k3, (D, Dc), dtype=jnp.float32) * 0.05
    bk = jax.random.normal(k4, (D,), dtype=jnp.float32) * 0.05
    wv = jax.random.normal(k5, (D, Dc), dtype=jnp.float32) * 0.05
    bv = jax.random.normal(k6, (D,), dtype=jnp.float32) * 0.05
    wo = jax.random.normal(k7, (D, D), dtype=jnp.float32) * 0.05
    bo = jax.random.normal(k8, (D,), dtype=jnp.float32) * 0.05

    fwd = jax.jit(functools.partial(cross_attention, n_heads=n_heads))
    out = fwd(x, y, wq, bq, wk, bk, wv, bv, wo, bo)
    out = jax.block_until_ready(out)

    ref = _reference(x, y, wq, bq, wk, bk, wv, bv, wo, bo, n_heads=n_heads)
    assert out.shape == (B, Sq, D)
    assert jnp.allclose(out, ref, rtol=2e-3, atol=2e-3), (
        float(jnp.max(jnp.abs(out - ref))))

    print("KERNEL_OK")
</pallas_src>

<mosaic_0001>
module attributes {stable_mosaic.version = 11 : i64} {
  func.func @_kv_linear_kernel(%arg0: i32, %arg1: i32, %arg2: i32, %arg3: memref<32x64xf32, #tpu.memory_space<vmem>>, %arg4: memref<64x32xf32, #tpu.memory_space<vmem>>, %arg5: memref<1x32xf32, #tpu.memory_space<vmem>>, %arg6: memref<64x32xf32, #tpu.memory_space<vmem>>, %arg7: memref<1x32xf32, #tpu.memory_space<vmem>>, %arg8: memref<32x32xf32, #tpu.memory_space<vmem>>, %arg9: memref<32x32xf32, #tpu.memory_space<vmem>>, %arg10: memref<32x32xf32, #tpu.memory_space<vmem>>, %arg11: memref<32x32xf32, #tpu.memory_space<vmem>>) attributes {dimension_semantics = [#tpu.dimension_semantics<parallel>, #tpu.dimension_semantics<parallel>, #tpu.dimension_semantics<arbitrary>], iteration_bounds = array<i64: 1, 1, 1>, scalar_prefetch = 0 : i64, scratch_operands = 2 : i64, tpu.core_type = #tpu.core_type<tc>, window_params = [{transform_indices = @transform_0, window_bounds = array<i64: 32, 64>}, {transform_indices = @transform_1, window_bounds = array<i64: 64, 32>}, {transform_indices = @transform_2, window_bounds = array<i64: 1, 32>}, {transform_indices = @transform_3, window_bounds = array<i64: 64, 32>}, {transform_indices = @transform_4, window_bounds = array<i64: 1, 32>}, {transform_indices = @transform_5, window_bounds = array<i64: 32, 32>}, {transform_indices = @transform_6, window_bounds = array<i64: 32, 32>}]} {
    %c0_i32 = arith.constant 0 : i32
    %0 = arith.cmpi eq, %arg2, %c0_i32 : i32
    %1 = arith.extui %0 : i1 to i32
    %c0_i32_0 = arith.constant 0 : i32
    %2 = arith.cmpi ne, %1, %c0_i32_0 : i32
    scf.if %2 {
      %cst_17 = arith.constant 0.000000e+00 : f32
      %17 = vector.broadcast %cst_17 : f32 to vector<32x32xf32>
      %c0_18 = arith.constant 0 : index
      %c0_19 = arith.constant 0 : index
      %18 = vector.load %arg10[%c0_18, %c0_19] : memref<32x32xf32, #tpu.memory_space<vmem>>, vector<32x32xf32>
      tpu.vector_store %arg10[%c0_18, %c0_19], %17 {strides = array<i32>} : memref<32x32xf32, #tpu.memory_space<vmem>>, vector<32x32xf32>,
      %cst_20 = arith.constant 0.000000e+00 : f32
      %19 = vector.broadcast %cst_20 : f32 to vector<32x32xf32>
      %c0_21 = arith.constant 0 : index
      %c0_22 = arith.constant 0 : index
      %20 = vector.load %arg11[%c0_21, %c0_22] : memref<32x32xf32, #tpu.memory_space<vmem>>, vector<32x32xf32>
      tpu.vector_store %arg11[%c0_21, %c0_22], %19 {strides = array<i32>} : memref<32x32xf32, #tpu.memory_space<vmem>>, vector<32x32xf32>,
    } else {
    }
    %c0 = arith.constant 0 : index
    %c0_1 = arith.constant 0 : index
    %3 = vector.load %arg3[%c0, %c0_1] : memref<32x64xf32, #tpu.memory_space<vmem>>, vector<32x64xf32>
    %c0_2 = arith.constant 0 : index
    %c0_3 = arith.constant 0 : index
    %4 = vector.load %arg10[%c0_2, %c0_3] : memref<32x32xf32, #tpu.memory_space<vmem>>, vector<32x32xf32>
    %c0_4 = arith.constant 0 : index
    %c0_5 = arith.constant 0 : index
    %5 = vector.load %arg4[%c0_4, %c0_5] : memref<64x32xf32, #tpu.memory_space<vmem>>, vector<64x32xf32>
    %cst = arith.constant dense<0.000000e+00> : vector<32x32xf32>
    %6 = tpu.matmul %3, %5, %cst {dimension_numbers = #tpu.dot_dimension_numbers<[1], [0], [0], [1], [0, 0, 1, 1], [], []>} : vector<32x64xf32>, vector<64x32xf32>, vector<32x32xf32> -> vector<32x32xf32>
    %7 = arith.addf %4, %6 : vector<32x32xf32>
    %c0_6 = arith.constant 0 : index
    %c0_7 = arith.constant 0 : index
    %8 = vector.load %arg10[%c0_6, %c0_7] : memref<32x32xf32, #tpu.memory_space<vmem>>, vector<32x32xf32>
    tpu.vector_store %arg10[%c0_6, %c0_7], %7 {strides = array<i32>} : memref<32x32xf32, #tpu.memory_space<vmem>>, vector<32x32xf32>,
    %c0_8 = arith.constant 0 : index
    %c0_9 = arith.constant 0 : index
    %9 = vector.load %arg11[%c0_8, %c0_9] : memref<32x32xf32, #tpu.memory_space<vmem>>, vector<32x32xf32>
    %c0_10 = arith.constant 0 : index
    %c0_11 = arith.constant 0 : index
    %10 = vector.load %arg6[%c0_10, %c0_11] : memref<64x32xf32, #tpu.memory_space<vmem>>, vector<64x32xf32>
    %cst_12 = arith.constant dense<0.000000e+00> : vector<32x32xf32>
    %11 = tpu.matmul %3, %10, %cst_12 {dimension_numbers = #tpu.dot_dimension_numbers<[1], [0], [0], [1], [0, 0, 1, 1], [], []>} : vector<32x64xf32>, vector<64x32xf32>, vector<32x32xf32> -> vector<32x32xf32>
    %12 = arith.addf %9, %11 : vector<32x32xf32>
    %c0_13 = arith.constant 0 : index
    %c0_14 = arith.constant 0 : index
    %13 = vector.load %arg11[%c0_13, %c0_14] : memref<32x32xf32, #tpu.memory_space<vmem>>, vector<32x32xf32>
    tpu.vector_store %arg11[%c0_13, %c0_14], %12 {strides = array<i32>} : memref<32x32xf32, #tpu.memory_space<vmem>>, vector<32x32xf32>,
    %c0_i32_15 = arith.constant 0 : i32
    %14 = arith.cmpi eq, %arg2, %c0_i32_15 : i32
    %15 = arith.extui %14 : i1 to i32
    %c0_i32_16 = arith.constant 0 : i32
    %16 = arith.cmpi ne, %15, %c0_i32_16 : i32
    scf.if %16 {
      %c0_17 = arith.constant 0 : index
      %c0_18 = arith.constant 0 : index
      %17 = vector.load %arg10[%c0_17, %c0_18] : memref<32x32xf32, #tpu.memory_space<vmem>>, vector<32x32xf32>
      %c0_19 = arith.constant 0 : index
      %c0_20 = arith.constant 0 : index
      %18 = vector.load %arg5[%c0_19, %c0_20] : memref<1x32xf32, #tpu.memory_space<vmem>>, vector<1x32xf32>
      %19 = vector.broadcast %18 : vector<1x32xf32> to vector<32x32xf32>
      %20 = arith.addf %17, %19 : vector<32x32xf32>
      %c0_21 = arith.constant 0 : index
      %c0_22 = arith.constant 0 : index
      %21 = vector.load %arg8[%c0_21, %c0_22] : memref<32x32xf32, #tpu.memory_space<vmem>>, vector<32x32xf32>
      tpu.vector_store %arg8[%c0_21, %c0_22], %20 {strides = array<i32>} : memref<32x32xf32, #tpu.memory_space<vmem>>, vector<32x32xf32>,
      %c0_23 = arith.constant 0 : index
      %c0_24 = arith.constant 0 : index
      %22 = vector.load %arg11[%c0_23, %c0_24] : memref<32x32xf32, #tpu.memory_space<vmem>>, vector<32x32xf32>
      %c0_25 = arith.constant 0 : index
      %c0_26 = arith.constant 0 : index
      %23 = vector.load %arg7[%c0_25, %c0_26] : memref<1x32xf32, #tpu.memory_space<vmem>>, vector<1x32xf32>
      %24 = vector.broadcast %23 : vector<1x32xf32> to vector<32x32xf32>
      %25 = arith.addf %22, %24 : vector<32x32xf32>
      %c0_27 = arith.constant 0 : index
      %c0_28 = arith.constant 0 : index
      %26 = vector.load %arg9[%c0_27, %c0_28] : memref<32x32xf32, #tpu.memory_space<vmem>>, vector<32x32xf32>
      tpu.vector_store %arg9[%c0_27, %c0_28], %25 {strides = array<i32>} : memref<32x32xf32, #tpu.memory_space<vmem>>, vector<32x32xf32>,
    } else {
    }
    return
  }
  func.func @transform_0(%arg0: i32, %arg1: i32, %arg2: i32) -> (i32, i32) {
    %c0_i32 = arith.constant 0 : i32
    return %arg0, %arg2 : i32, i32
  }
  func.func @transform_1(%arg0: i32, %arg1: i32, %arg2: i32) -> (i32, i32) {
    %c0_i32 = arith.constant 0 : i32
    return %arg2, %arg1 : i32, i32
  }
  func.func @transform_2(%arg0: i32, %arg1: i32, %arg2: i32) -> (i32, i32) {
    %c0_i32 = arith.constant 0 : i32
    %c0_i32_0 = arith.constant 0 : i32
    return %c0_i32, %arg1 : i32, i32
  }
  func.func @transform_3(%arg0: i32, %arg1: i32, %arg2: i32) -> (i32, i32) {
    %c0_i32 = arith.constant 0 : i32
    return %arg2, %arg1 : i32, i32
  }
  func.func @transform_4(%arg0: i32, %arg1: i32, %arg2: i32) -> (i32, i32) {
    %c0_i32 = arith.constant 0 : i32
    %c0_i32_0 = arith.constant 0 : i32
    return %c0_i32, %arg1 : i32, i32
  }
  func.func @transform_5(%arg0: i32, %arg1: i32, %arg2: i32) -> (i32, i32) {
    %c0_i32 = arith.constant 0 : i32
    return %arg0, %arg1 : i32, i32
  }
  func.func @transform_6(%arg0: i32, %arg1: i32, %arg2: i32) -> (i32, i32) {
    %c0_i32 = arith.constant 0 : i32
    return %arg0, %arg1 : i32, i32
  }
}

module attributes {stable_mosaic.version = 11 : i64} {
  func.func @_linear_kernel(%arg0: i32, %arg1: i32, %arg2: i32, %arg3: memref<16x32xf32, #tpu.memory_space<vmem>>, %arg4: memref<32x32xf32, #tpu.memory_space<vmem>>, %arg5: memref<1x32xf32, #tpu.memory_space<vmem>>, %arg6: memref<16x32xf32, #tpu.memory_space<vmem>>, %arg7: memref<16x32xf32, #tpu.memory_space<vmem>>) attributes {dimension_semantics = [#tpu.dimension_semantics<parallel>, #tpu.dimension_semantics<parallel>, #tpu.dimension_semantics<arbitrary>], iteration_bounds = array<i64: 1, 1, 1>, scalar_prefetch = 0 : i64, scratch_operands = 1 : i64, tpu.core_type = #tpu.core_type<tc>, window_params = [{transform_indices = @transform_0, window_bounds = array<i64: 16, 32>}, {transform_indices = @transform_1, window_bounds = array<i64: 32, 32>}, {transform_indices = @transform_2, window_bounds = array<i64: 1, 32>}, {transform_indices = @transform_3, window_bounds = array<i64: 16, 32>}]} {
    %c0_i32 = arith.constant 0 : i32
    %0 = arith.cmpi eq, %arg2, %c0_i32 : i32
    %1 = arith.extui %0 : i1 to i32
    %c0_i32_0 = arith.constant 0 : i32
    %2 = arith.cmpi ne, %1, %c0_i32_0 : i32
    scf.if %2 {
      %cst_10 = arith.constant 0.000000e+00 : f32
      %12 = vector.broadcast %cst_10 : f32 to vector<16x32xf32>
      %c0_11 = arith.constant 0 : index
      %c0_12 = arith.constant 0 : index
      %13 = vector.load %arg7[%c0_11, %c0_12] : memref<16x32xf32, #tpu.memory_space<vmem>>, vector<16x32xf32>
      tpu.vector_store %arg7[%c0_11, %c0_12], %12 {strides = array<i32>} : memref<16x32xf32, #tpu.memory_space<vmem>>, vector<16x32xf32>,
    } else {
    }
    %c0 = arith.constant 0 : index
    %c0_1 = arith.constant 0 : index
    %3 = vector.load %arg7[%c0, %c0_1] : memref<16x32xf32, #tpu.memory_space<vmem>>, vector<16x32xf32>
    %c0_2 = arith.constant 0 : index
    %c0_3 = arith.constant 0 : index
    %4 = vector.load %arg3[%c0_2, %c0_3] : memref<16x32xf32, #tpu.memory_space<vmem>>, vector<16x32xf32>
    %c0_4 = arith.constant 0 : index
    %c0_5 = arith.constant 0 : index
    %5 = vector.load %arg4[%c0_4, %c0_5] : memref<32x32xf32, #tpu.memory_space<vmem>>, vector<32x32xf32>
    %cst = arith.constant dense<0.000000e+00> : vector<16x32xf32>
    %6 = tpu.matmul %4, %5, %cst {dimension_numbers = #tpu.dot_dimension_numbers<[1], [0], [0], [1], [0, 0, 1, 1], [], []>} : vector<16x32xf32>, vector<32x32xf32>, vector<16x32xf32> -> vector<16x32xf32>
    %7 = arith.addf %3, %6 : vector<16x32xf32>
    %c0_6 = arith.constant 0 : index
    %c0_7 = arith.constant 0 : index
    %8 = vector.load %arg7[%c0_6, %c0_7] : memref<16x32xf32, #tpu.memory_space<vmem>>, vector<16x32xf32>
    tpu.vector_store %arg7[%c0_6, %c0_7], %7 {strides = array<i32>} : memref<16x32xf32, #tpu.memory_space<vmem>>, vector<16x32xf32>,
    %c0_i32_8 = arith.constant 0 : i32
    %9 = arith.cmpi eq, %arg2, %c0_i32_8 : i32
    %10 = arith.extui %9 : i1 to i32
    %c0_i32_9 = arith.constant 0 : i32
    %11 = arith.cmpi ne, %10, %c0_i32_9 : i32
    scf.if %11 {
      %c0_10 = arith.constant 0 : index
      %c0_11 = arith.constant 0 : index
      %12 = vector.load %arg7[%c0_10, %c0_11] : memref<16x32xf32, #tpu.memory_space<vmem>>, vector<16x32xf32>
      %c0_12 = arith.constant 0 : index
      %c0_13 = arith.constant 0 : index
      %13 = vector.load %arg5[%c0_12, %c0_13] : memref<1x32xf32, #tpu.memory_space<vmem>>, vector<1x32xf32>
      %14 = vector.broadcast %13 : vector<1x32xf32> to vector<16x32xf32>
      %15 = arith.addf %12, %14 : vector<16x32xf32>
      %c0_14 = arith.constant 0 : index
      %c0_15 = arith.constant 0 : index
      %16 = vector.load %arg6[%c0_14, %c0_15] : memref<16x32xf32, #tpu.memory_space<vmem>>, vector<16x32xf32>
      tpu.vector_store %arg6[%c0_14, %c0_15], %15 {strides = array<i32>} : memref<16x32xf32, #tpu.memory_space<vmem>>, vector<16x32xf32>,
    } else {
    }
    return
  }
  func.func @transform_0(%arg0: i32, %arg1: i32, %arg2: i32) -> (i32, i32) {
    %c0_i32 = arith.constant 0 : i32
    return %arg0, %arg2 : i32, i32
  }
  func.func @transform_1(%arg0: i32, %arg1: i32, %arg2: i32) -> (i32, i32) {
    %c0_i32 = arith.constant 0 : i32
    return %arg2, %arg1 : i32, i32
  }
  func.func @transform_2(%arg0: i32, %arg1: i32, %arg2: i32) -> (i32, i32) {
    %c0_i32 = arith.constant 0 : i32
    %c0_i32_0 = arith.constant 0 : i32
    return %c0_i32, %arg1 : i32, i32
  }
  func.func @transform_3(%arg0: i32, %arg1: i32, %arg2: i32) -> (i32, i32) {
    %c0_i32 = arith.constant 0 : i32
    return %arg0, %arg1 : i32, i32
  }
}

module attributes {stable_mosaic.version = 11 : i64} {
  func.func @_flash_kernel(%arg0: i32, %arg1: i32, %arg2: i32, %arg3: memref<1x8x8xf32, #tpu.memory_space<vmem>>, %arg4: memref<1x16x8xf32, #tpu.memory_space<vmem>>, %arg5: memref<1x16x8xf32, #tpu.memory_space<vmem>>, %arg6: memref<1x8x8xf32, #tpu.memory_space<vmem>>, %arg7: memref<8x1xf32, #tpu.memory_space<vmem>>, %arg8: memref<8x1xf32, #tpu.memory_space<vmem>>, %arg9: memref<8x8xf32, #tpu.memory_space<vmem>>) attributes {dimension_semantics = [#tpu.dimension_semantics<parallel>, #tpu.dimension_semantics<parallel>, #tpu.dimension_semantics<arbitrary>], iteration_bounds = array<i64: 8, 1, 1>, scalar_prefetch = 0 : i64, scratch_operands = 3 : i64, tpu.core_type = #tpu.core_type<tc>, window_params = [{transform_indices = @transform_0, window_bounds = array<i64: 1, 8, 8>}, {transform_indices = @transform_1, window_bounds = array<i64: 1, 16, 8>}, {transform_indices = @transform_2, window_bounds = array<i64: 1, 16, 8>}, {transform_indices = @transform_3, window_bounds = array<i64: 1, 8, 8>}]} {
    %c0_i32 = arith.constant 0 : i32
    %0 = arith.cmpi eq, %arg2, %c0_i32 : i32
    %1 = arith.extui %0 : i1 to i32
    %c0_i32_0 = arith.constant 0 : i32
    %2 = arith.cmpi ne, %1, %c0_i32_0 : i32
    scf.if %2 {
      %cst_27 = arith.constant 0xFF800000 : f32
      %37 = vector.broadcast %cst_27 : f32 to vector<8x1xf32>
      %c0_28 = arith.constant 0 : index
      %c0_29 = arith.constant 0 : index
      %38 = vector.load %arg7[%c0_28, %c0_29] : memref<8x1xf32, #tpu.memory_space<vmem>>, vector<8x1xf32>
      tpu.vector_store %arg7[%c0_28, %c0_29], %37 {strides = array<i32>} : memref<8x1xf32, #tpu.memory_space<vmem>>, vector<8x1xf32>,
      %cst_30 = arith.constant 0.000000e+00 : f32
      %39 = vector.broadcast %cst_30 : f32 to vector<8x1xf32>
      %c0_31 = arith.constant 0 : index
      %c0_32 = arith.constant 0 : index
      %40 = vector.load %arg8[%c0_31, %c0_32] : memref<8x1xf32, #tpu.memory_space<vmem>>, vector<8x1xf32>
      tpu.vector_store %arg8[%c0_31, %c0_32], %39 {strides = array<i32>} : memref<8x1xf32, #tpu.memory_space<vmem>>, vector<8x1xf32>,
      %cst_33 = arith.constant 0.000000e+00 : f32
      %41 = vector.broadcast %cst_33 : f32 to vector<8x8xf32>
      %c0_34 = arith.constant 0 : index
      %c0_35 = arith.constant 0 : index
      %42 = vector.load %arg9[%c0_34, %c0_35] : memref<8x8xf32, #tpu.memory_space<vmem>>, vector<8x8xf32>
      tpu.vector_store %arg9[%c0_34, %c0_35], %41 {strides = array<i32>} : memref<8x8xf32, #tpu.memory_space<vmem>>, vector<8x8xf32>,
    } else {
    }
    %c0 = arith.constant 0 : index
    %c0_1 = arith.constant 0 : index
    %c0_2 = arith.constant 0 : index
    %3 = vector.load %arg3[%c0, %c0_1, %c0_2] : memref<1x8x8xf32, #tpu.memory_space<vmem>>, vector<1x8x8xf32>
    %4 = vector.shape_cast %3 : vector<1x8x8xf32> to vector<8x8xf32>
    %cst = arith.constant 0.353553385 : f32
    %5 = vector.broadcast %cst : f32 to vector<8x8xf32>
    %6 = arith.mulf %4, %5 : vector<8x8xf32>
    %c0_3 = arith.constant 0 : index
    %c0_4 = arith.constant 0 : index
    %c0_5 = arith.constant 0 : index
    %7 = vector.load %arg4[%c0_3, %c0_4, %c0_5] : memref<1x16x8xf32, #tpu.memory_space<vmem>>, vector<1x16x8xf32>
    %8 = vector.shape_cast %7 : vector<1x16x8xf32> to vector<16x8xf32>
    %c0_6 = arith.constant 0 : index
    %c0_7 = arith.constant 0 : index
    %c0_8 = arith.constant 0 : index
    %9 = vector.load %arg5[%c0_6, %c0_7, %c0_8] : memref<1x16x8xf32, #tpu.memory_space<vmem>>, vector<1x16x8xf32>
    %10 = vector.shape_cast %9 : vector<1x16x8xf32> to vector<16x8xf32>
    %cst_9 = arith.constant dense<0.000000e+00> : vector<8x16xf32>
    %11 = tpu.matmul %6, %8, %cst_9 {dimension_numbers = #tpu.dot_dimension_numbers<[1], [1], [0], [0], [0, 0, 1, 0], [], []>} : vector<8x8xf32>, vector<16x8xf32>, vector<8x16xf32> -> vector<8x16xf32>
    %c0_10 = arith.constant 0 : index
    %c0_11 = arith.constant 0 : index
    %12 = vector.load %arg7[%c0_10, %c0_11] : memref<8x1xf32, #tpu.memory_space<vmem>>, vector<8x1xf32>
    %cst_12 = arith.constant dense<0xFF800000> : vector<8xf32>
    %13 = vector.multi_reduction <maximumf>, %11, %cst_12 [1] : vector<8x16xf32> to vector<8xf32>
    %14 = vector.shape_cast %13 : vector<8xf32> to vector<8x1xf32>
    %15 = arith.maximumf %12, %14 : vector<8x1xf32>
    %16 = arith.subf %12, %15 : vector<8x1xf32>
    %17 = math.exp %16 : vector<8x1xf32>
    %18 = vector.broadcast %15 : vector<8x1xf32> to vector<8x16xf32>
    %19 = arith.subf %11, %18 : vector<8x16xf32>
    %20 = math.exp %19 : vector<8x16xf32>
    %c0_13 = arith.constant 0 : index
    %c0_14 = arith.constant 0 : index
    %21 = vector.load %arg8[%c0_13, %c0_14] : memref<8x1xf32, #tpu.memory_space<vmem>>, vector<8x1xf32>
    %22 = arith.mulf %17, %21 : vector<8x1xf32>
    %cst_15 = arith.constant dense<0.000000e+00> : vector<8xf32>
    %23 = vector.multi_reduction <add>, %20, %cst_15 [1] : vector<8x16xf32> to vector<8xf32>
    %24 = vector.shape_cast %23 : vector<8xf32> to vector<8x1xf32>
    %25 = arith.addf %22, %24 : vector<8x1xf32>
    %c0_16 = arith.constant 0 : index
    %c0_17 = arith.constant 0 : index
    %26 = vector.load %arg8[%c0_16, %c0_17] : memref<8x1xf32, #tpu.memory_space<vmem>>, vector<8x1xf32>
    tpu.vector_store %arg8[%c0_16, %c0_17], %25 {strides = array<i32>} : memref<8x1xf32, #tpu.memory_space<vmem>>, vector<8x1xf32>,
    %c0_18 = arith.constant 0 : index
    %c0_19 = arith.constant 0 : index
    %27 = vector.load %arg9[%c0_18, %c0_19] : memref<8x8xf32, #tpu.memory_space<vmem>>, vector<8x8xf32>
    %28 = vector.broadcast %17 : vector<8x1xf32> to vector<8x8xf32>
    %29 = arith.mulf %28, %27 : vector<8x8xf32>
    %cst_20 = arith.constant dense<0.000000e+00> : vector<8x8xf32>
    %30 = tpu.matmul %20, %10, %cst_20 {dimension_numbers = #tpu.dot_dimension_numbers<[1], [0], [0], [1], [0, 0, 1, 1], [], []>} : vector<8x16xf32>, vector<16x8xf32>, vector<8x8xf32> -> vector<8x8xf32>
    %31 = arith.addf %29, %30 : vector<8x8xf32>
    %c0_21 = arith.constant 0 : index
    %c0_22 = arith.constant 0 : index
    %32 = vector.load %arg9[%c0_21, %c0_22] : memref<8x8xf32, #tpu.memory_space<vmem>>, vector<8x8xf32>
    tpu.vector_store %arg9[%c0_21, %c0_22], %31 {strides = array<i32>} : memref<8x8xf32, #tpu.memory_space<vmem>>, vector<8x8xf32>,
    %c0_23 = arith.constant 0 : index
    %c0_24 = arith.constant 0 : index
    %33 = vector.load %arg7[%c0_23, %c0_24] : memref<8x1xf32, #tpu.memory_space<vmem>>, vector<8x1xf32>
    tpu.vector_store %arg7[%c0_23, %c0_24], %15 {strides = array<i32>} : memref<8x1xf32, #tpu.memory_space<vmem>>, vector<8x1xf32>,
    %c0_i32_25 = arith.constant 0 : i32
    %34 = arith.cmpi eq, %arg2, %c0_i32_25 : i32
    %35 = arith.extui %34 : i1 to i32
    %c0_i32_26 = arith.constant 0 : i32
    %36 = arith.cmpi ne, %35, %c0_i32_26 : i32
    scf.if %36 {
      %c0_27 = arith.constant 0 : index
      %c0_28 = arith.constant 0 : index
      %37 = vector.load %arg8[%c0_27, %c0_28] : memref<8x1xf32, #tpu.memory_space<vmem>>, vector<8x1xf32>
      %38 = tpu.reciprocal %37 {approx = true} : vector<8x1xf32> -> vector<8x1xf32>
      %39 = arith.mulf %37, %38 : vector<8x1xf32>
      %cst_29 = arith.constant 2.000000e+00 : f32
      %40 = vector.broadcast %cst_29 : f32 to vector<8x1xf32>
      %41 = arith.subf %40, %39 : vector<8x1xf32>
      %42 = arith.mulf %38, %41 : vector<8x1xf32>
      %c0_30 = arith.constant 0 : index
      %c0_31 = arith.constant 0 : index
      %43 = vector.load %arg9[%c0_30, %c0_31] : memref<8x8xf32, #tpu.memory_space<vmem>>, vector<8x8xf32>
      %44 = vector.broadcast %42 : vector<8x1xf32> to vector<8x8xf32>
      %45 = arith.mulf %43, %44 : vector<8x8xf32>
      %c0_32 = arith.constant 0 : index
      %c0_33 = arith.constant 0 : index
      %c0_34 = arith.constant 0 : index
      %46 = vector.load %arg6[%c0_32, %c0_33, %c0_34] : memref<1x8x8xf32, #tpu.memory_space<vmem>>, vector<1x8x8xf32>
      %47 = vector.shape_cast %46 : vector<1x8x8xf32> to vector<8x8xf32>
      %48 = vector.shape_cast %45 : vector<8x8xf32> to vector<1x8x8xf32>
      tpu.vector_store %arg6[%c0_32, %c0_33, %c0_34], %48 {strides = array<i32>} : memref<1x8x8xf32, #tpu.memory_space<vmem>>, vector<1x8x8xf32>,
    } else {
    }
    return
  }
  func.func @transform_0(%arg0: i32, %arg1: i32, %arg2: i32) -> (i32, i32, i32) {
    %c0_i32 = arith.constant 0 : i32
    %c0_i32_0 = arith.constant 0 : i32
    return %arg0, %arg1, %c0_i32 : i32, i32, i32
  }
  func.func @transform_1(%arg0: i32, %arg1: i32, %arg2: i32) -> (i32, i32, i32) {
    %c0_i32 = arith.constant 0 : i32
    %c0_i32_0 = arith.constant 0 : i32
    return %arg0, %arg2, %c0_i32 : i32, i32, i32
  }
  func.func @transform_2(%arg0: i32, %arg1: i32, %arg2: i32) -> (i32, i32, i32) {
    %c0_i32 = arith.constant 0 : i32
    %c0_i32_0 = arith.constant 0 : i32
    return %arg0, %arg2, %c0_i32 : i32, i32, i32
  }
  func.func @transform_3(%arg0: i32, %arg1: i32, %arg2: i32) -> (i32, i32, i32) {
    %c0_i32 = arith.constant 0 : i32
    %c0_i32_0 = arith.constant 0 : i32
    return %arg0, %arg1, %c0_i32 : i32, i32, i32
  }
}

module attributes {stable_mosaic.version = 11 : i64} {
  func.func @_linear_kernel(%arg0: i32, %arg1: i32, %arg2: i32, %arg3: memref<16x32xf32, #tpu.memory_space<vmem>>, %arg4: memref<32x32xf32, #tpu.memory_space<vmem>>, %arg5: memref<1x32xf32, #tpu.memory_space<vmem>>, %arg6: memref<16x32xf32, #tpu.memory_space<vmem>>, %arg7: memref<16x32xf32, #tpu.memory_space<vmem>>) attributes {dimension_semantics = [#tpu.dimension_semantics<parallel>, #tpu.dimension_semantics<parallel>, #tpu.dimension_semantics<arbitrary>], iteration_bounds = array<i64: 1, 1, 1>, scalar_prefetch = 0 : i64, scratch_operands = 1 : i64, tpu.core_type = #tpu.core_type<tc>, window_params = [{transform_indices = @transform_0, window_bounds = array<i64: 16, 32>}, {transform_indices = @transform_1, window_bounds = array<i64: 32, 32>}, {transform_indices = @transform_2, window_bounds = array<i64: 1, 32>}, {transform_indices = @transform_3, window_bounds = array<i64: 16, 32>}]} {
    %c0_i32 = arith.constant 0 : i32
    %0 = arith.cmpi eq, %arg2, %c0_i32 : i32
    %1 = arith.extui %0 : i1 to i32
    %c0_i32_0 = arith.constant 0 : i32
    %2 = arith.cmpi ne, %1, %c0_i32_0 : i32
    scf.if %2 {
      %cst_10 = arith.constant 0.000000e+00 : f32
      %12 = vector.broadcast %cst_10 : f32 to vector<16x32xf32>
      %c0_11 = arith.constant 0 : index
      %c0_12 = arith.constant 0 : index
      %13 = vector.load %arg7[%c0_11, %c0_12] : memref<16x32xf32, #tpu.memory_space<vmem>>, vector<16x32xf32>
      tpu.vector_store %arg7[%c0_11, %c0_12], %12 {strides = array<i32>} : memref<16x32xf32, #tpu.memory_space<vmem>>, vector<16x32xf32>,
    } else {
    }
    %c0 = arith.constant 0 : index
    %c0_1 = arith.constant 0 : index
    %3 = vector.load %arg7[%c0, %c0_1] : memref<16x32xf32, #tpu.memory_space<vmem>>, vector<16x32xf32>
    %c0_2 = arith.constant 0 : index
    %c0_3 = arith.constant 0 : index
    %4 = vector.load %arg3[%c0_2, %c0_3] : memref<16x32xf32, #tpu.memory_space<vmem>>, vector<16x32xf32>
    %c0_4 = arith.constant 0 : index
    %c0_5 = arith.constant 0 : index
    %5 = vector.load %arg4[%c0_4, %c0_5] : memref<32x32xf32, #tpu.memory_space<vmem>>, vector<32x32xf32>
    %cst = arith.constant dense<0.000000e+00> : vector<16x32xf32>
    %6 = tpu.matmul %4, %5, %cst {dimension_numbers = #tpu.dot_dimension_numbers<[1], [0], [0], [1], [0, 0, 1, 1], [], []>} : vector<16x32xf32>, vector<32x32xf32>, vector<16x32xf32> -> vector<16x32xf32>
    %7 = arith.addf %3, %6 : vector<16x32xf32>
    %c0_6 = arith.constant 0 : index
    %c0_7 = arith.constant 0 : index
    %8 = vector.load %arg7[%c0_6, %c0_7] : memref<16x32xf32, #tpu.memory_space<vmem>>, vector<16x32xf32>
    tpu.vector_store %arg7[%c0_6, %c0_7], %7 {strides = array<i32>} : memref<16x32xf32, #tpu.memory_space<vmem>>, vector<16x32xf32>,
    %c0_i32_8 = arith.constant 0 : i32
    %9 = arith.cmpi eq, %arg2, %c0_i32_8 : i32
    %10 = arith.extui %9 : i1 to i32
    %c0_i32_9 = arith.constant 0 : i32
    %11 = arith.cmpi ne, %10, %c0_i32_9 : i32
    scf.if %11 {
      %c0_10 = arith.constant 0 : index
      %c0_11 = arith.constant 0 : index
      %12 = vector.load %arg7[%c0_10, %c0_11] : memref<16x32xf32, #tpu.memory_space<vmem>>, vector<16x32xf32>
      %c0_12 = arith.constant 0 : index
      %c0_13 = arith.constant 0 : index
      %13 = vector.load %arg5[%c0_12, %c0_13] : memref<1x32xf32, #tpu.memory_space<vmem>>, vector<1x32xf32>
      %14 = vector.broadcast %13 : vector<1x32xf32> to vector<16x32xf32>
      %15 = arith.addf %12, %14 : vector<16x32xf32>
      %c0_14 = arith.constant 0 : index
      %c0_15 = arith.constant 0 : index
      %16 = vector.load %arg6[%c0_14, %c0_15] : memref<16x32xf32, #tpu.memory_space<vmem>>, vector<16x32xf32>
      tpu.vector_store %arg6[%c0_14, %c0_15], %15 {strides = array<i32>} : memref<16x32xf32, #tpu.memory_space<vmem>>, vector<16x32xf32>,
    } else {
    }
    return
  }
  func.func @transform_0(%arg0: i32, %arg1: i32, %arg2: i32) -> (i32, i32) {
    %c0_i32 = arith.constant 0 : i32
    return %arg0, %arg2 : i32, i32
  }
  func.func @transform_1(%arg0: i32, %arg1: i32, %arg2: i32) -> (i32, i32) {
    %c0_i32 = arith.constant 0 : i32
    return %arg2, %arg1 : i32, i32
  }
  func.func @transform_2(%arg0: i32, %arg1: i32, %arg2: i32) -> (i32, i32) {
    %c0_i32 = arith.constant 0 : i32
    %c0_i32_0 = arith.constant 0 : i32
    return %c0_i32, %arg1 : i32, i32
  }
  func.func @transform_3(%arg0: i32, %arg1: i32, %arg2: i32) -> (i32, i32) {
    %c0_i32 = arith.constant 0 : i32
    return %arg0, %arg1 : i32, i32
  }
}

</mosaic_0001>

<llo_original>
// kernel: cross_attention.5
$region0: #{cross_attention.5}
  #allocation0 [shape = 'u32[]', space=smem, size = 0x4, offset = 0x4, fixed_abs, tag = 'smem constant byte address 0x4 - core index']
  #allocation1 [shape = 'u32[144,128]{1,0:T(1,128)}', space=vmem, size = 0x12000, scoped, tag = 'internal scratch']
  #allocation2 [shape = 'f32[32,32]{1,0:T(8,128)}', space=vmem, size = 0x4000, scoped, tag = 'scratch operand']
  #allocation3 [shape = 'f32[32,32]{1,0:T(8,128)}', space=vmem, size = 0x4000, scoped, tag = 'scratch operand']
  %s0 = inlined_call_operand.vmem [shape: f32[32,64], index: 0, kind: input, shape index: {}]
  %s1 = inlined_call_operand.vmem [shape: f32[64,32], index: 1, kind: input, shape index: {}]
  %s2 = inlined_call_operand.vmem [shape: f32[1,32], index: 2, kind: input, shape index: {}]
  %s3 = inlined_call_operand.vmem [shape: f32[64,32], index: 3, kind: input, shape index: {}]
  %s4 = inlined_call_operand.vmem [shape: f32[1,32], index: 4, kind: input, shape index: {}]
  %s5 = inlined_call_operand.vmem [shape: f32[32,32], index: 5, kind: output, shape index: {0}]
  %s6 = inlined_call_operand.vmem [shape: f32[32,32], index: 6, kind: output, shape index: {1}]
  %7 = xla_tuple %s5, %s6
  %s8 = sld [smem:[#allocation0]]
  $region46: #{cross_attention.5} parent=0
    _
  %s10 = ssub.s32 1, %s8
  %s11 = scalar_select 0, %s10, %s8
  // Predicated region
  $region2: #{cross_attention.5} parent=0 // pred_check
    _
  $region3: #{cross_attention.5} parent=0 // pred_check_branch
    %13 = sbr.rel (0) target = $region5
  $region4: #{cross_attention.5} parent=0 // pred_region
    _
  $region5: #{cross_attention.5} parent=0 // pred_fallthru
    _
  // Predicated region
  $region6: #{cross_attention.5} parent=0 // pred_check
    _
  $region7: #{cross_attention.5} parent=0 // pred_check_branch
    %15 = sbr.rel (0) target = $region9
  $region8: #{cross_attention.5} parent=0 // pred_region
    _
  $region9: #{cross_attention.5} parent=0 // pred_fallthru
    _
  // Predicated region
  $region10: #{cross_attention.5} parent=0 // pred_check
    _
  $region11: #{cross_attention.5} parent=0 // pred_check_branch
    %17 = sbr.rel (0) target = $region13
  $region12: #{cross_attention.5} parent=0 // pred_region
    _
  $region13: #{cross_attention.5} parent=0 // pred_fallthru
    _
  // Predicated region
  $region14: #{cross_attention.5} parent=0 // pred_check
    _
  $region15: #{cross_attention.5} parent=0 // pred_check_branch
    %19 = sbr.rel (0) target = $region17
  $region16: #{cross_attention.5} parent=0 // pred_region
    _
  $region17: #{cross_attention.5} parent=0 // pred_fallthru
    _
  // Predicated region
  $region18: #{cross_attention.5} parent=0 // pred_check
    _
  $region19: #{cross_attention.5} parent=0 // pred_check_branch
    %21 = sbr.rel (0) target = $region21
  $region20: #{cross_attention.5} parent=0 // pred_region
    _
  $region21: #{cross_attention.5} parent=0 // pred_fallthru
    _
  %p22 = scmp.eq.s32.totalorder 0, 0
  // Predicated region
  $region22: #{cross_attention.5} parent=0 // pred_check
    %p23 = pneg %p22
  $region23: #{cross_attention.5} parent=0 // pred_check_branch
    %25 = sbr.rel (%p23) target = $region25
  $region24: #{cross_attention.5} parent=0 // pred_region
    %vm26 = vcmask 261120
    %27 = vst.msk [vmem:[#allocation2] sm:$0xff] %vm26, 0.0
    %28 = vst.msk [vmem:[#allocation2 + $0x8] sm:$0xff] %vm26, 0.0
    %29 = vst.msk [vmem:[#allocation2 + $0x10] sm:$0xff] %vm26, 0.0
    %30 = vst.msk [vmem:[#allocation2 + $0x18] sm:$0xff] %vm26, 0.0
    %31 = vst.msk [vmem:[#allocation3] sm:$0xff] %vm26, 0.0
    %32 = vst.msk [vmem:[#allocation3 + $0x8] sm:$0xff] %vm26, 0.0
    %33 = vst.msk [vmem:[#allocation3 + $0x10] sm:$0xff] %vm26, 0.0
    %34 = vst.msk [vmem:[#allocation3 + $0x18] sm:$0xff] %vm26, 0.0
  $region25: #{cross_attention.5} parent=0 // pred_fallthru
    _
  %v35 = vld [vmem:[%s0] sm:$0xff]
  %v36 = vld [vmem:[%s0 + $0x8] sm:$0xff]
  %v37 = vld [vmem:[%s0 + $0x10] sm:$0xff]
  %v38 = vld [vmem:[%s0 + $0x18] sm:$0xff]
  %v39 = vld [vmem:[#allocation2] sm:$0xff]
  %v40 = vld [vmem:[#allocation2 + $0x8] sm:$0xff]
  %v41 = vld [vmem:[#allocation2 + $0x10] sm:$0xff]
  %v42 = vld [vmem:[#allocation2 + $0x18] sm:$0xff]
  %v43 = vld [vmem:[%s1] sm:$0xff]
  %v44 = vld [vmem:[%s1 + $0x8] sm:$0xff]
  %v45 = vld [vmem:[%s1 + $0x10] sm:$0xff]
  %v46 = vld [vmem:[%s1 + $0x18] sm:$0xff]
  %v47 = vld [vmem:[%s1 + $0x20] sm:$0xff]
  %v48 = vld [vmem:[%s1 + $0x28] sm:$0xff]
  %v49 = vld [vmem:[%s1 + $0x30] sm:$0xff]
  %v50 = vld [vmem:[%s1 + $0x38] sm:$0xff]
  %vm51 = vcmask 523264
  %v53 = vsel %vm51, %v35, 0
  %v56 = vsel %vm51, %v36, 0
  %v59 = vsel %vm51, %v37, 0
  %v62 = vsel %vm51, %v38, 0
  %64 = vmatprep.subr.mxu0 0.0
  %65 = vmatpush1.msra.mxu0 %v43
  %66 = vmatprep.subr.mxu0 0.0
  %67 = vmatpush1.msra.mxu0 %v44
  %68 = vmatprep.subr.mxu0 0.0
  %69 = vmatpush1.msra.mxu0 %v45
  %70 = vmatprep.subr.mxu0 0.0
  %71 = vmatpush1.msra.mxu0 %v46
  %72 = vmatprep.subr.mxu0 0.0
  %73 = vmatpush1.msra.mxu0 %v47
  %74 = vmatprep.subr.mxu0 0.0
  %75 = vmatpush1.msra.mxu0 %v48
  %76 = vmatprep.subr.mxu0 0.0
  %77 = vmatpush1.msra.mxu0 %v49
  %78 = vmatprep.subr.mxu0 0.0
  %79 = vmatpush1.msra.mxu0 %v50
  %80 = vmatprep.subr.mxu0 0.0
  %81 = vmatpush1.msra.mxu0 0.0
  %82 = vmatprep.subr.mxu0 0.0
  %83 = vmatpush1.msra.mxu0 0.0
  %84 = vmatprep.subr.mxu0 0.0
  %85 = vmatpush1.msra.mxu0 0.0
  %86 = vmatprep.subr.mxu0 0.0
  %87 = vmatpush1.msra.mxu0 0.0
  %88 = vmatprep.subr.mxu0 0.0
  %89 = vmatpush1.msra.mxu0 0.0
  %90 = vmatprep.subr.mxu0 0.0
  %91 = vmatpush1.msra.mxu0 0.0
  %92 = vmatprep.subr.mxu0 0.0
  %93 = vmatpush1.msra.mxu0 0.0
  %94 = vmatprep.subr.mxu0 0.0
  %95 = vmatpush1.msra.mxu0 0.0
  %96 = vmatprep.subr.mxu0 0.0
  %97 = vmatpush1.msra.mxu0 0.0
  %98 = vmatprep.subr.mxu0 0.0
  %99 = vmatpush1.msra.mxu0 0.0
  %100 = vmatprep.subr.mxu0 0.0
  %101 = vmatpush1.msra.mxu0 0.0
  %102 = vmatprep.subr.mxu0 0.0
  %103 = vmatpush1.msra.mxu0 0.0
  %104 = vmatprep.subr.mxu0 0.0
  %105 = vmatpush1.msra.mxu0 0.0
  %106 = vmatprep.subr.mxu0 0.0
  %107 = vmatpush1.msra.mxu0 0.0
  %108 = vmatprep.subr.mxu0 0.0
  %109 = vmatpush1.msra.mxu0 0.0
  %110 = vmatprep.subr.mxu0 0.0
  %111 = vmatpush1.msra.mxu0 0.0
  %112 = vmatprep.subr.mxu0 0.0
  %113 = vmatpush1.msra.mxu0 0.0
  %114 = vmatprep.subr.mxu0 0.0
  %115 = vmatpush1.msra.mxu0 0.0
  %116 = vmatprep.subr.mxu0 0.0
  %117 = vmatpush1.msra.mxu0 0.0
  %118 = vmatprep.subr.mxu0 0.0
  %119 = vmatpush1.msra.mxu0 0.0
  %120 = vmatprep.subr.mxu0 0.0
  %121 = vmatpush1.msra.mxu0 0.0
  %122 = vmatprep.subr.mxu0 0.0
  %123 = vmatpush1.msra.mxu0 0.0
  %124 = vmatprep.subr.mxu0 0.0
  %125 = vmatpush1.msra.mxu0 0.0
  %126 = vmatprep.subr.mxu0 0.0
  %127 = vmatpush1.msra.mxu0 0.0
  %128 = vmatprep.mubr.f32.mxu0 0.0
  %129 = vmatmul.mubr.f32.gmra.mrb[0].mxu0 %v53
  %v130 = vpop.f32.mrb[0].mxu0
  %v131 = vadd.f32 0.0, %v130
  %v132 = vpop.f32.mrb[0].mxu0
  %133 = vmatprep.mubr.f32.mxu0 0.0
  %134 = vmatmul.mubr.f32.gmra.mrb[0].mxu0 %v56
  %v135 = vpop.f32.mrb[0].mxu0
  %v136 = vadd.f32 0.0, %v135
  %v137 = vpop.f32.mrb[0].mxu0
  %138 = vmatprep.mubr.f32.mxu0 0.0
  %139 = vmatmul.mubr.f32.gmra.mrb[0].mxu0 %v59
  %v140 = vpop.f32.mrb[0].mxu0
  %v141 = vadd.f32 0.0, %v140
  %v142 = vpop.f32.mrb[0].mxu0
  %143 = vmatprep.mubr.f32.mxu0 0.0
  %144 = vmatmul.mubr.f32.gmra.mrb[0].mxu0 %v62
  %v145 = vpop.f32.mrb[0].mxu0
  %v146 = vadd.f32 0.0, %v145
  %v147 = vpop.f32.mrb[0].mxu0
  %148 = vdwg.mxu0
  %v149 = vadd.f32 %v39, %v131
  %v150 = vadd.f32 %v40, %v136
  %v151 = vadd.f32 %v41, %v141
  %v152 = vadd.f32 %v42, %v146
  %vm153 = vcmask 261120
  %154 = vst.msk [vmem:[#allocation2] sm:$0xff] %vm153, %v149
  %155 = vst.msk [vmem:[#allocation2 + $0x8] sm:$0xff] %vm153, %v150
  %156 = vst.msk [vmem:[#allocation2 + $0x10] sm:$0xff] %vm153, %v151
  %157 = vst.msk [vmem:[#allocation2 + $0x18] sm:$0xff] %vm153, %v152
  %v158 = vld [vmem:[#allocation3] sm:$0xff]
  %v159 = vld [vmem:[#allocation3 + $0x8] sm:$0xff]
  %v160 = vld [vmem:[#allocation3 + $0x10] sm:$0xff]
  %v161 = vld [vmem:[#allocation3 + $0x18] sm:$0xff]
  %v162 = vld [vmem:[%s3] sm:$0xff]
  %v163 = vld [vmem:[%s3 + $0x8] sm:$0xff]
  %v164 = vld [vmem:[%s3 + $0x10] sm:$0xff]
  %v165 = vld [vmem:[%s3 + $0x18] sm:$0xff]
  %v166 = vld [vmem:[%s3 + $0x20] sm:$0xff]
  %v167 = vld [vmem:[%s3 + $0x28] sm:$0xff]
  %v168 = vld [vmem:[%s3 + $0x30] sm:$0xff]
  %v169 = vld [vmem:[%s3 + $0x38] sm:$0xff]
  %170 = vmatprep.subr.mxu0 0.0
  %171 = vmatpush1.msra.mxu0 %v162
  %172 = vmatprep.subr.mxu0 0.0
  %173 = vmatpush1.msra.mxu0 %v163
  %174 = vmatprep.subr.mxu0 0.0
  %175 = vmatpush1.msra.mxu0 %v164
  %176 = vmatprep.subr.mxu0 0.0
  %177 = vmatpush1.msra.mxu0 %v165
  %178 = vmatprep.subr.mxu0 0.0
  %179 = vmatpush1.msra.mxu0 %v166
  %180 = vmatprep.subr.mxu0 0.0
  %181 = vmatpush1.msra.mxu0 %v167
  %182 = vmatprep.subr.mxu0 0.0
  %183 = vmatpush1.msra.mxu0 %v168
  %184 = vmatprep.subr.mxu0 0.0
  %185 = vmatpush1.msra.mxu0 %v169
  %186 = vmatprep.subr.mxu0 0.0
  %187 = vmatpush1.msra.mxu0 0.0
  %188 = vmatprep.subr.mxu0 0.0
  %189 = vmatpush1.msra.mxu0 0.0
  %190 = vmatprep.subr.mxu0 0.0
  %191 = vmatpush1.msra.mxu0 0.0
  %192 = vmatprep.subr.mxu0 0.0
  %193 = vmatpush1.msra.mxu0 0.0
  %194 = vmatprep.subr.mxu0 0.0
  %195 = vmatpush1.msra.mxu0 0.0
  %196 = vmatprep.subr.mxu0 0.0
  %197 = vmatpush1.msra.mxu0 0.0
  %198 = vmatprep.subr.mxu0 0.0
  %199 = vmatpush1.msra.mxu0 0.0
  %200 = vmatprep.subr.mxu0 0.0
  %201 = vmatpush1.msra.mxu0 0.0
  %202 = vmatprep.subr.mxu0 0.0
  %203 = vmatpush1.msra.mxu0 0.0
  %204 = vmatprep.subr.mxu0 0.0
  %205 = vmatpush1.msra.mxu0 0.0
  %206 = vmatprep.subr.mxu0 0.0
  %207 = vmatpush1.msra.mxu0 0.0
  %208 = vmatprep.subr.mxu0 0.0
  %209 = vmatpush1.msra.mxu0 0.0
  %210 = vmatprep.subr.mxu0 0.0
  %211 = vmatpush1.msra.mxu0 0.0
  %212 = vmatprep.subr.mxu0 0.0
  %213 = vmatpush1.msra.mxu0 0.0
  %214 = vmatprep.subr.mxu0 0.0
  %215 = vmatpush1.msra.mxu0 0.0
  %216 = vmatprep.subr.mxu0 0.0
  %217 = vmatpush1.msra.mxu0 0.0
  %218 = vmatprep.subr.mxu0 0.0
  %219 = vmatpush1.msra.mxu0 0.0
  %220 = vmatprep.subr.mxu0 0.0
  %221 = vmatpush1.msra.mxu0 0.0
  %222 = vmatprep.subr.mxu0 0.0
  %223 = vmatpush1.msra.mxu0 0.0
  %224 = vmatprep.subr.mxu0 0.0
  %225 = vmatpush1.msra.mxu0 0.0
  %226 = vmatprep.subr.mxu0 0.0
  %227 = vmatpush1.msra.mxu0 0.0
  %228 = vmatprep.subr.mxu0 0.0
  %229 = vmatpush1.msra.mxu0 0.0
  %230 = vmatprep.subr.mxu0 0.0
  %231 = vmatpush1.msra.mxu0 0.0
  %232 = vmatprep.subr.mxu0 0.0
  %233 = vmatpush1.msra.mxu0 0.0
  %234 = vmatprep.mubr.f32.mxu0 0.0
  %235 = vmatmul.mubr.f32.gmra.mrb[0].mxu0 %v53
  %v236 = vpop.f32.mrb[0].mxu0
  %v237 = vadd.f32 0.0, %v236
  %v238 = vpop.f32.mrb[0].mxu0
  %239 = vmatprep.mubr.f32.mxu0 0.0
  %240 = vmatmul.mubr.f32.gmra.mrb[0].mxu0 %v56
  %v241 = vpop.f32.mrb[0].mxu0
  %v242 = vadd.f32 0.0, %v241
  %v243 = vpop.f32.mrb[0].mxu0
  %244 = vmatprep.mubr.f32.mxu0 0.0
  %245 = vmatmul.mubr.f32.gmra.mrb[0].mxu0 %v59
  %v246 = vpop.f32.mrb[0].mxu0
  %v247 = vadd.f32 0.0, %v246
  %v248 = vpop.f32.mrb[0].mxu0
  %249 = vmatprep.mubr.f32.mxu0 0.0
  %250 = vmatmul.mubr.f32.gmra.mrb[0].mxu0 %v62
  %v251 = vpop.f32.mrb[0].mxu0
  %v252 = vadd.f32 0.0, %v251
  %v253 = vpop.f32.mrb[0].mxu0
  %254 = vdwg.mxu0
  %v255 = vadd.f32 %v158, %v237
  %v256 = vadd.f32 %v159, %v242
  %v257 = vadd.f32 %v160, %v247
  %v258 = vadd.f32 %v161, %v252
  %259 = vst.msk [vmem:[#allocation3] sm:$0xff] %vm153, %v255
  %260 = vst.msk [vmem:[#allocation3 + $0x8] sm:$0xff] %vm153, %v256
  %261 = vst.msk [vmem:[#allocation3 + $0x10] sm:$0xff] %vm153, %v257
  %262 = vst.msk [vmem:[#allocation3 + $0x18] sm:$0xff] %vm153, %v258
  // Predicated region
  $region26: #{cross_attention.5} parent=0 // pred_check
    %p263 = pneg %p22
  $region27: #{cross_attention.5} parent=0 // pred_check_branch
    %265 = sbr.rel (%p263) target = $region29
  $region28: #{cross_attention.5} parent=0 // pred_region
    %v266 = vld [vmem:[#allocation2] sm:$0xff]
    %v267 = vld [vmem:[#allocation2 + $0x8] sm:$0xff]
    %v268 = vld [vmem:[#allocation2 + $0x10] sm:$0xff]
    %v269 = vld [vmem:[#allocation2 + $0x18] sm:$0xff]
    %v270 = vld [vmem:[%s2] sm:$0x1]
    %v272 = vlaneseq
    %v273 = vshrl.u32 %v272, 7
    %v274 = vsub.s32 0, %v273
    %v275 = vrot.slane %v270, %v274
    %v277 = vadd.f32 %v266, %v275
    %v278 = vadd.f32 %v267, %v275
    %v279 = vadd.f32 %v268, %v275
    %v280 = vadd.f32 %v269, %v275
    %281 = vst.msk [vmem:[%s5] sm:$0xff] %vm153, %v277
    %282 = vst.msk [vmem:[%s5 + $0x8] sm:$0xff] %vm153, %v278
    %283 = vst.msk [vmem:[%s5 + $0x10] sm:$0xff] %vm153, %v279
    %284 = vst.msk [vmem:[%s5 + $0x18] sm:$0xff] %vm153, %v280
    %v285 = vld [vmem:[#allocation3] sm:$0xff]
    %v286 = vld [vmem:[#allocation3 + $0x8] sm:$0xff]
    %v287 = vld [vmem:[#allocation3 + $0x10] sm:$0xff]
    %v288 = vld [vmem:[#allocation3 + $0x18] sm:$0xff]
    %v289 = vld [vmem:[%s4] sm:$0x1]
    %v291 = vlaneseq
    %v292 = vshrl.u32 %v291, 7
    %v293 = vsub.s32 0, %v292
    %v294 = vrot.slane %v289, %v293
    %v296 = vadd.f32 %v285, %v294
    %v297 = vadd.f32 %v286, %v294
    %v298 = vadd.f32 %v287, %v294
    %v299 = vadd.f32 %v288, %v294
    %300 = vst.msk [vmem:[%s6] sm:$0xff] %vm153, %v296
    %301 = vst.msk [vmem:[%s6 + $0x8] sm:$0xff] %vm153, %v297
    %302 = vst.msk [vmem:[%s6 + $0x10] sm:$0xff] %vm153, %v298
    %303 = vst.msk [vmem:[%s6 + $0x18] sm:$0xff] %vm153, %v299
  $region29: #{cross_attention.5} parent=0 // pred_fallthru
    _
  // Predicated region
  $region30: #{cross_attention.5} parent=0 // pred_check
    _
  $region31: #{cross_attention.5} parent=0 // pred_check_branch
    %305 = sbr.rel (0) target = $region33
  $region32: #{cross_attention.5} parent=0 // pred_region
    _
  $region33: #{cross_attention.5} parent=0 // pred_fallthru
    _
  // Predicated region
  $region34: #{cross_attention.5} parent=0 // pred_check
    _
  $region35: #{cross_attention.5} parent=0 // pred_check_branch
    %307 = sbr.rel (0) target = $region37
  $region36: #{cross_attention.5} parent=0 // pred_region
    _
  $region37: #{cross_attention.5} parent=0 // pred_fallthru
    _
  // Predicated region
  $region38: #{cross_attention.5} parent=0 // pred_check
    _
  $region39: #{cross_attention.5} parent=0 // pred_check_branch
    %309 = sbr.rel (0) target = $region41
  $region40: #{cross_attention.5} parent=0 // pred_region
    _
  $region41: #{cross_attention.5} parent=0 // pred_fallthru
    _
  // Predicated region
  $region42: #{cross_attention.5} parent=0 // pred_check
    _
  $region43: #{cross_attention.5} parent=0 // pred_check_branch
    %311 = sbr.rel (0) target = $region45
  $region44: #{cross_attention.5} parent=0 // pred_region
    _
  $region45: #{cross_attention.5} parent=0 // pred_fallthru
    _

// kernel: cross_attention.4
$region0: #{cross_attention.4}
  #allocation0 [shape = 'u32[]', space=smem, size = 0x4, offset = 0x4, fixed_abs, tag = 'smem constant byte address 0x4 - core index']
  #allocation1 [shape = 'u32[144,128]{1,0:T(1,128)}', space=vmem, size = 0x12000, scoped, tag = 'internal scratch']
  #allocation2 [shape = 'f32[16,32]{1,0:T(8,128)}', space=vmem, size = 0x2000, scoped, tag = 'scratch operand']
  %s0 = inlined_call_operand.vmem [shape: f32[16,32], index: 0, kind: input, shape index: {}]
  %s1 = inlined_call_operand.vmem [shape: f32[32,32], index: 1, kind: input, shape index: {}]
  %s2 = inlined_call_operand.vmem [shape: f32[1,32], index: 2, kind: input, shape index: {}]
  %s3 = inlined_call_operand.vmem [shape: f32[16,32], index: 3, kind: output, shape index: {}]
  %s4 = sld [smem:[#allocation0]]
  $region30: #{cross_attention.4} parent=0
    _
  %s6 = ssub.s32 1, %s4
  %s7 = scalar_select 0, %s6, %s4
  // Predicated region
  $region2: #{cross_attention.4} parent=0 // pred_check
    _
  $region3: #{cross_attention.4} parent=0 // pred_check_branch
    %9 = sbr.rel (0) target = $region5
  $region4: #{cross_attention.4} parent=0 // pred_region
    _
  $region5: #{cross_attention.4} parent=0 // pred_fallthru
    _
  // Predicated region
  $region6: #{cross_attention.4} parent=0 // pred_check
    _
  $region7: #{cross_attention.4} parent=0 // pred_check_branch
    %11 = sbr.rel (0) target = $region9
  $region8: #{cross_attention.4} parent=0 // pred_region
    _
  $region9: #{cross_attention.4} parent=0 // pred_fallthru
    _
  // Predicated region
  $region10: #{cross_attention.4} parent=0 // pred_check
    _
  $region11: #{cross_attention.4} parent=0 // pred_check_branch
    %13 = sbr.rel (0) target = $region13
  $region12: #{cross_attention.4} parent=0 // pred_region
    _
  $region13: #{cross_attention.4} parent=0 // pred_fallthru
    _
  %p14 = scmp.eq.s32.totalorder 0, 0
  // Predicated region
  $region14: #{cross_attention.4} parent=0 // pred_check
    %p15 = pneg %p14
  $region15: #{cross_attention.4} parent=0 // pred_check_branch
    %17 = sbr.rel (%p15) target = $region17
  $region16: #{cross_attention.4} parent=0 // pred_region
    %vm18 = vcmask 261120
    %19 = vst.msk [vmem:[#allocation2] sm:$0xff] %vm18, 0.0
    %20 = vst.msk [vmem:[#allocation2 + $0x8] sm:$0xff] %vm18, 0.0
  $region17: #{cross_attention.4} parent=0 // pred_fallthru
    _
  %v21 = vld [vmem:[#allocation2] sm:$0xff]
  %v22 = vld [vmem:[#allocation2 + $0x8] sm:$0xff]
  %v23 = vld [vmem:[%s0] sm:$0xff]
  %v24 = vld [vmem:[%s0 + $0x8] sm:$0xff]
  %v25 = vld [vmem:[%s1] sm:$0xff]
  %v26 = vld [vmem:[%s1 + $0x8] sm:$0xff]
  %v27 = vld [vmem:[%s1 + $0x10] sm:$0xff]
  %v28 = vld [vmem:[%s1 + $0x18] sm:$0xff]
  %vm29 = vcmask 261120
  %v31 = vsel %vm29, %v23, 0
  %v34 = vsel %vm29, %v24, 0
  %36 = vmatprep.subr.mxu0 0.0
  %37 = vmatpush1.msra.mxu0 %v25
  %38 = vmatprep.subr.mxu0 0.0
  %39 = vmatpush1.msra.mxu0 %v26
  %40 = vmatprep.subr.mxu0 0.0
  %41 = vmatpush1.msra.mxu0 %v27
  %42 = vmatprep.subr.mxu0 0.0
  %43 = vmatpush1.msra.mxu0 %v28
  %44 = vmatprep.subr.mxu0 0.0
  %45 = vmatpush1.msra.mxu0 0.0
  %46 = vmatprep.subr.mxu0 0.0
  %47 = vmatpush1.msra.mxu0 0.0
  %48 = vmatprep.subr.mxu0 0.0
  %49 = vmatpush1.msra.mxu0 0.0
  %50 = vmatprep.subr.mxu0 0.0
  %51 = vmatpush1.msra.mxu0 0.0
  %52 = vmatprep.subr.mxu0 0.0
  %53 = vmatpush1.msra.mxu0 0.0
  %54 = vmatprep.subr.mxu0 0.0
  %55 = vmatpush1.msra.mxu0 0.0
  %56 = vmatprep.subr.mxu0 0.0
  %57 = vmatpush1.msra.mxu0 0.0
  %58 = vmatprep.subr.mxu0 0.0
  %59 = vmatpush1.msra.mxu0 0.0
  %60 = vmatprep.subr.mxu0 0.0
  %61 = vmatpush1.msra.mxu0 0.0
  %62 = vmatprep.subr.mxu0 0.0
  %63 = vmatpush1.msra.mxu0 0.0
  %64 = vmatprep.subr.mxu0 0.0
  %65 = vmatpush1.msra.mxu0 0.0
  %66 = vmatprep.subr.mxu0 0.0
  %67 = vmatpush1.msra.mxu0 0.0
  %68 = vmatprep.subr.mxu0 0.0
  %69 = vmatpush1.msra.mxu0 0.0
  %70 = vmatprep.subr.mxu0 0.0
  %71 = vmatpush1.msra.mxu0 0.0
  %72 = vmatprep.subr.mxu0 0.0
  %73 = vmatpush1.msra.mxu0 0.0
  %74 = vmatprep.subr.mxu0 0.0
  %75 = vmatpush1.msra.mxu0 0.0
  %76 = vmatprep.subr.mxu0 0.0
  %77 = vmatpush1.msra.mxu0 0.0
  %78 = vmatprep.subr.mxu0 0.0
  %79 = vmatpush1.msra.mxu0 0.0
  %80 = vmatprep.subr.mxu0 0.0
  %81 = vmatpush1.msra.mxu0 0.0
  %82 = vmatprep.subr.mxu0 0.0
  %83 = vmatpush1.msra.mxu0 0.0
  %84 = vmatprep.subr.mxu0 0.0
  %85 = vmatpush1.msra.mxu0 0.0
  %86 = vmatprep.subr.mxu0 0.0
  %87 = vmatpush1.msra.mxu0 0.0
  %88 = vmatprep.subr.mxu0 0.0
  %89 = vmatpush1.msra.mxu0 0.0
  %90 = vmatprep.subr.mxu0 0.0
  %91 = vmatpush1.msra.mxu0 0.0
  %92 = vmatprep.subr.mxu0 0.0
  %93 = vmatpush1.msra.mxu0 0.0
  %94 = vmatprep.subr.mxu0 0.0
  %95 = vmatpush1.msra.mxu0 0.0
  %96 = vmatprep.subr.mxu0 0.0
  %97 = vmatpush1.msra.mxu0 0.0
  %98 = vmatprep.subr.mxu0 0.0
  %99 = vmatpush1.msra.mxu0 0.0
  %100 = vmatprep.mubr.f32.mxu0 0.0
  %101 = vmatmul.mubr.f32.gmra.mrb[0].mxu0 %v31
  %v102 = vpop.f32.mrb[0].mxu0
  %v103 = vadd.f32 0.0, %v102
  %v104 = vpop.f32.mrb[0].mxu0
  %105 = vmatprep.mubr.f32.mxu0 0.0
  %106 = vmatmul.mubr.f32.gmra.mrb[0].mxu0 %v34
  %v107 = vpop.f32.mrb[0].mxu0
  %v108 = vadd.f32 0.0, %v107
  %v109 = vpop.f32.mrb[0].mxu0
  %110 = vdwg.mxu0
  %v111 = vadd.f32 %v21, %v103
  %v112 = vadd.f32 %v22, %v108
  %113 = vst.msk [vmem:[#allocation2] sm:$0xff] %vm29, %v111
  %114 = vst.msk [vmem:[#allocation2 + $0x8] sm:$0xff] %vm29, %v112
  // Predicated region
  $region18: #{cross_attention.4} parent=0 // pred_check
    %p115 = pneg %p14
  $region19: #{cross_attention.4} parent=0 // pred_check_branch
    %117 = sbr.rel (%p115) target = $region21
  $region20: #{cross_attention.4} parent=0 // pred_region
    %v118 = vld [vmem:[#allocation2] sm:$0xff]
    %v119 = vld [vmem:[#allocation2 + $0x8] sm:$0xff]
    %v120 = vld [vmem:[%s2] sm:$0x1]
    %v122 = vlaneseq
    %v123 = vshrl.u32 %v122, 7
    %v124 = vsub.s32 0, %v123
    %v125 = vrot.slane %v120, %v124
    %v127 = vadd.f32 %v118, %v125
    %v128 = vadd.f32 %v119, %v125
    %129 = vst.msk [vmem:[%s3] sm:$0xff] %vm29, %v127
    %130 = vst.msk [vmem:[%s3 + $0x8] sm:$0xff] %vm29, %v128
  $region21: #{cross_attention.4} parent=0 // pred_fallthru
    _
  // Predicated region
  $region22: #{cross_attention.4} parent=0 // pred_check
    _
  $region23: #{cross_attention.4} parent=0 // pred_check_branch
    %132 = sbr.rel (0) target = $region25
  $region24: #{cross_attention.4} parent=0 // pred_region
    _
  $region25: #{cross_attention.4} parent=0 // pred_fallthru
    _
  // Predicated region
  $region26: #{cross_attention.4} parent=0 // pred_check
    _
  $region27: #{cross_attention.4} parent=0 // pred_check_branch
    %134 = sbr.rel (0) target = $region29
  $region28: #{cross_attention.4} parent=0 // pred_region
    _
  $region29: #{cross_attention.4} parent=0 // pred_fallthru
    _

// kernel: cross_attention.7
$region0: #{cross_attention.7}
  #allocation0 [shape = 'u32[]', space=smem, size = 0x4, offset = 0x4, fixed_abs, tag = 'smem constant byte address 0x4 - core index']
  #allocation1 [shape = 'u32[144,128]{1,0:T(1,128)}', space=vmem, size = 0x12000, scoped, tag = 'internal scratch']
  #allocation2 [shape = 'f32[16,32]{1,0:T(8,128)}', space=vmem, size = 0x2000, scoped, tag = 'scratch operand']
  %s0 = inlined_call_operand.vmem [shape: f32[16,32], index: 0, kind: input, shape index: {}]
  %s1 = inlined_call_operand.vmem [shape: f32[32,32], index: 1, kind: input, shape index: {}]
  %s2 = inlined_call_operand.vmem [shape: f32[1,32], index: 2, kind: input, shape index: {}]
  %s3 = inlined_call_operand.hbm [shape: f32[16,32], index: 3, kind: output, shape index: {}]
  %s4 = sld [smem:[#allocation0]]
  $region30: #{cross_attention.7} parent=0
    _
  %s6 = ssub.s32 1, %s4
  %s7 = scalar_select 0, %s6, %s4
  $region1: #{cross_attention.7} parent=0
    #allocation3 [shape = 'u8[8192]{0}', space=vmem, size = 0x2000, scoped, tag = 'output window, operand 0, single buffered']
    #allocation4 [shape = 's32[1]{0}', space=sflag, size = 0x4, scoped, tag = 'scoped memory for cross_attention.7']
    %8 = vsyncpa [#allocation4], 0
    // Predicated region
    $region2: #{cross_attention.7} parent=1 // pred_check
      _
    $region3: #{cross_attention.7} parent=1 // pred_check_branch
      %10 = sbr.rel (0) target = $region5
    $region4: #{cross_attention.7} parent=1 // pred_region
      _
    $region5: #{cross_attention.7} parent=1 // pred_fallthru
      _
    // Predicated region
    $region6: #{cross_attention.7} parent=1 // pred_check
      _
    $region7: #{cross_attention.7} parent=1 // pred_check_branch
      %12 = sbr.rel (0) target = $region9
    $region8: #{cross_attention.7} parent=1 // pred_region
      _
    $region9: #{cross_attention.7} parent=1 // pred_fallthru
      _
    // Predicated region
    $region10: #{cross_attention.7} parent=1 // pred_check
      _
    $region11: #{cross_attention.7} parent=1 // pred_check_branch
      %14 = sbr.rel (0) target = $region13
    $region12: #{cross_attention.7} parent=1 // pred_region
      _
    $region13: #{cross_attention.7} parent=1 // pred_fallthru
      _
    %p15 = scmp.eq.s32.totalorder 0, 0
    // Predicated region
    $region14: #{cross_attention.7} parent=1 // pred_check
      %p16 = pneg %p15
    $region15: #{cross_attention.7} parent=1 // pred_check_branch
      %18 = sbr.rel (%p16) target = $region17
    $region16: #{cross_attention.7} parent=1 // pred_region
      %vm19 = vcmask 261120
      %20 = vst.msk [vmem:[#allocation2] sm:$0xff] %vm19, 0.0
      %21 = vst.msk [vmem:[#allocation2 + $0x8] sm:$0xff] %vm19, 0.0
    $region17: #{cross_attention.7} parent=1 // pred_fallthru
      _
    %v22 = vld [vmem:[#allocation2] sm:$0xff]
    %v23 = vld [vmem:[#allocation2 + $0x8] sm:$0xff]
    %v24 = vld [vmem:[%s0] sm:$0xff]
    %v25 = vld [vmem:[%s0 + $0x8] sm:$0xff]
    %v26 = vld [vmem:[%s1] sm:$0xff]
    %v27 = vld [vmem:[%s1 + $0x8] sm:$0xff]
    %v28 = vld [vmem:[%s1 + $0x10] sm:$0xff]
    %v29 = vld [vmem:[%s1 + $0x18] sm:$0xff]
    %vm30 = vcmask 261120
    %v32 = vsel %vm30, %v24, 0
    %v35 = vsel %vm30, %v25, 0
    %37 = vmatprep.subr.mxu0 0.0
    %38 = vmatpush1.msra.mxu0 %v26
    %39 = vmatprep.subr.mxu0 0.0
    %40 = vmatpush1.msra.mxu0 %v27
    %41 = vmatprep.subr.mxu0 0.0
    %42 = vmatpush1.msra.mxu0 %v28
    %43 = vmatprep.subr.mxu0 0.0
    %44 = vmatpush1.msra.mxu0 %v29
    %45 = vmatprep.subr.mxu0 0.0
    %46 = vmatpush1.msra.mxu0 0.0
    %47 = vmatprep.subr.mxu0 0.0
    %48 = vmatpush1.msra.mxu0 0.0
    %49 = vmatprep.subr.mxu0 0.0
    %50 = vmatpush1.msra.mxu0 0.0
    %51 = vmatprep.subr.mxu0 0.0
    %52 = vmatpush1.msra.mxu0 0.0
    %53 = vmatprep.subr.mxu0 0.0
    %54 = vmatpush1.msra.mxu0 0.0
    %55 = vmatprep.subr.mxu0 0.0
    %56 = vmatpush1.msra.mxu0 0.0
    %57 = vmatprep.subr.mxu0 0.0
    %58 = vmatpush1.msra.mxu0 0.0
    %59 = vmatprep.subr.mxu0 0.0
    %60 = vmatpush1.msra.mxu0 0.0
    %61 = vmatprep.subr.mxu0 0.0
    %62 = vmatpush1.msra.mxu0 0.0
    %63 = vmatprep.subr.mxu0 0.0
    %64 = vmatpush1.msra.mxu0 0.0
    %65 = vmatprep.subr.mxu0 0.0
    %66 = vmatpush1.msra.mxu0 0.0
    %67 = vmatprep.subr.mxu0 0.0
    %68 = vmatpush1.msra.mxu0 0.0
    %69 = vmatprep.subr.mxu0 0.0
    %70 = vmatpush1.msra.mxu0 0.0
    %71 = vmatprep.subr.mxu0 0.0
    %72 = vmatpush1.msra.mxu0 0.0
    %73 = vmatprep.subr.mxu0 0.0
    %74 = vmatpush1.msra.mxu0 0.0
    %75 = vmatprep.subr.mxu0 0.0
    %76 = vmatpush1.msra.mxu0 0.0
    %77 = vmatprep.subr.mxu0 0.0
    %78 = vmatpush1.msra.mxu0 0.0
    %79 = vmatprep.subr.mxu0 0.0
    %80 = vmatpush1.msra.mxu0 0.0
    %81 = vmatprep.subr.mxu0 0.0
    %82 = vmatpush1.msra.mxu0 0.0
    %83 = vmatprep.subr.mxu0 0.0
    %84 = vmatpush1.msra.mxu0 0.0
    %85 = vmatprep.subr.mxu0 0.0
    %86 = vmatpush1.msra.mxu0 0.0
    %87 = vmatprep.subr.mxu0 0.0
    %88 = vmatpush1.msra.mxu0 0.0
    %89 = vmatprep.subr.mxu0 0.0
    %90 = vmatpush1.msra.mxu0 0.0
    %91 = vmatprep.subr.mxu0 0.0
    %92 = vmatpush1.msra.mxu0 0.0
    %93 = vmatprep.subr.mxu0 0.0
    %94 = vmatpush1.msra.mxu0 0.0
    %95 = vmatprep.subr.mxu0 0.0
    %96 = vmatpush1.msra.mxu0 0.0
    %97 = vmatprep.subr.mxu0 0.0
    %98 = vmatpush1.msra.mxu0 0.0
    %99 = vmatprep.subr.mxu0 0.0
    %100 = vmatpush1.msra.mxu0 0.0
    %101 = vmatprep.mubr.f32.mxu0 0.0
    %102 = vmatmul.mubr.f32.gmra.mrb[0].mxu0 %v32
    %v103 = vpop.f32.mrb[0].mxu0
    %v104 = vadd.f32 0.0, %v103
    %v105 = vpop.f32.mrb[0].mxu0
    %106 = vmatprep.mubr.f32.mxu0 0.0
    %107 = vmatmul.mubr.f32.gmra.mrb[0].mxu0 %v35
    %v108 = vpop.f32.mrb[0].mxu0
    %v109 = vadd.f32 0.0, %v108
    %v110 = vpop.f32.mrb[0].mxu0
    %111 = vdwg.mxu0
    %v112 = vadd.f32 %v22, %v104
    %v113 = vadd.f32 %v23, %v109
    %114 = vst.msk [vmem:[#allocation2] sm:$0xff] %vm30, %v112
    %115 = vst.msk [vmem:[#allocation2 + $0x8] sm:$0xff] %vm30, %v113
    // Predicated region
    $region18: #{cross_attention.7} parent=1 // pred_check
      %p116 = pneg %p15
    $region19: #{cross_attention.7} parent=1 // pred_check_branch
      %118 = sbr.rel (%p116) target = $region21
    $region20: #{cross_attention.7} parent=1 // pred_region
      %v119 = vld [vmem:[#allocation2] sm:$0xff]
      %v120 = vld [vmem:[#allocation2 + $0x8] sm:$0xff]
      %v121 = vld [vmem:[%s2] sm:$0x1]
      %v123 = vlaneseq
      %v124 = vshrl.u32 %v123, 7
      %v125 = vsub.s32 0, %v124
      %v126 = vrot.slane %v121, %v125
      %v128 = vadd.f32 %v119, %v126
      %v129 = vadd.f32 %v120, %v126
      %130 = vst.msk [vmem:[#allocation3] sm:$0xff] %vm30, %v128
      %131 = vst.msk [vmem:[#allocation3 + $0x8] sm:$0xff] %vm30, %v129
    $region21: #{cross_attention.7} parent=1 // pred_fallthru
      _
    // Predicated region
    $region22: #{cross_attention.7} parent=1 // pred_check
      _
    $region23: #{cross_attention.7} parent=1 // pred_check_branch
      %133 = sbr.rel (0) target = $region25
    $region24: #{cross_attention.7} parent=1 // pred_region
      %s135 = ssub.s32 256, 256
      %136 = vsyncadd [#allocation4], %s135
      %s137 = sshll.u32 [#allocation3], 4
      %s138 = int_to_ptr.vmem [resolvable:$true] %s137
      %143 = dma.vmem_to_hbm [thread:$0]  %s138, 256, %s3, [#allocation4], 128, 128, 8
    $region25: #{cross_attention.7} parent=1 // pred_fallthru
      _
    // Predicated region
    $region26: #{cross_attention.7} parent=1 // pred_check
      _
    $region27: #{cross_attention.7} parent=1 // pred_check_branch
      %145 = sbr.rel (0) target = $region29
    $region28: #{cross_attention.7} parent=1 // pred_region
      %146 = dma.done [#allocation4], 256
    $region29: #{cross_attention.7} parent=1 // pred_fallthru
      _
    %147 = vsyncpa [#allocation4], 1

// kernel: cross_attention.6
$region0: #{cross_attention.6}
  #allocation0 [shape = 'u32[]', space=smem, size = 0x4, offset = 0x4, fixed_abs, tag = 'smem constant byte address 0x4 - core index']
  #allocation1 [shape = 'u32[144,128]{1,0:T(1,128)}', space=vmem, size = 0x12000, scoped, tag = 'internal scratch']
  #allocation2 [shape = 'f32[8,1]{1,0:T(8,128)}', space=vmem, size = 0x1000, scoped, tag = 'scratch operand']
  #allocation3 [shape = 'f32[8,1]{1,0:T(8,128)}', space=vmem, size = 0x1000, scoped, tag = 'scratch operand']
  #allocation4 [shape = 'f32[8,8]{1,0:T(8,128)}', space=vmem, size = 0x1000, scoped, tag = 'scratch operand']
  %s0 = inlined_call_operand.vmem [shape: f32[8,8,8], index: 0, kind: input, shape index: {}]
  %s1 = inlined_call_operand.vmem [shape: f32[8,16,8], index: 1, kind: input, shape index: {}]
  %s2 = inlined_call_operand.vmem [shape: f32[8,16,8], index: 2, kind: input, shape index: {}]
  %s3 = inlined_call_operand.vmem [shape: f32[8,8,8], index: 3, kind: output, shape index: {}]
  %s4 = sld [smem:[#allocation0]]
  $region53: #{cross_attention.6} parent=0
    _
  %s6 = ssub.s32 1, %s4
  %s7 = scalar_select 0, %s6, %s4
  loop: start=0, step=1, limit=10
  $region2: #{cross_attention.6} parent=0 // loop_pre_header
    _
  $region3: #{cross_attention.6} parent=0 // loop_header
    %s9 = sphi 0, %s13
    %p10 = scmp.ge.s32.totalorder %s9, 10
    %s16 = sphi 0, %s35
    %s17 = sphi 0, %s31
    %s18 = sphi 0, %s27
    %s19 = sphi 0, %s16
    %s20 = sphi 0, %s17
    %s21 = sphi 0, %s18
    %s22 = sphi 0, %s19
    %s23 = sphi 0, %s20
    %s24 = sphi 0, %s21
    %s40 = sphi 0, %s42
    %s43 = sphi 0, %s40
    %s44 = sphi 0, %s43
    %s60 = sphi 0, %s44
    %s68 = sphi 0, %s70
    %s71 = sphi 0, %s68
    %s72 = sphi 0, %s71
    %s88 = sphi 0, %s72
    %s96 = sphi 0, %s98
    %s99 = sphi 0, %s96
    %s100 = sphi 0, %s99
    %s116 = sphi 0, %s100
    %s124 = sphi 0, %s126
    %s127 = sphi 0, %s124
    %s128 = sphi 0, %s127
    %s144 = sphi 0, %s128
  $region4: #{cross_attention.6} parent=0 // loop_header_branch
    %12 = sbr.rel (%p10) target = $region8
  $region5: #{cross_attention.6} parent=0 // loop_body
    %s14 = ssub.s32 %s9, 1
    %s15 = ssub.s32 %s9, 2
    %s25 = sadd.s32 1, %s18
    %p26 = scmp.ge.s32.totalorder %s25, 1
    %s27 = scalar_select %p26, 0, %s25
    %s28 = sadd.s32 1, %s17
    %s29 = scalar_select %p26, %s28, %s17
    %p30 = scmp.ge.s32.totalorder %s29, 1
    %s31 = scalar_select %p30, 0, %s29
    %s32 = sadd.s32 1, %s16
    %s33 = scalar_select %p30, %s32, %s16
    %p34 = scmp.ge.s32.totalorder %s33, 8
    %s35 = scalar_select %p34, 0, %s33
    %s36 = ssub.s32 %s16, %s35
    %s37 = ssub.s32 %s17, %s31
    %s38 = sor.u32 %s36, %s37
    %p39 = scmp.eq.s32.totalorder %s38, 0
    %s41 = sadd.s32 %s40, 1
    %s42 = scalar_select %p39, %s40, %s41
    %p45 = pneg %p39
    %p46 = scmp.eq.s32.totalorder %s9, 7
    %p47 = por %p45, %p46
    %p48 = scmp.ne.s32.totalorder %s40, %s43
    %p49 = scmp.eq.s32.totalorder %s9, 0
    %p50 = por %p48, %p49
    %p51 = scmp.ne.s32.totalorder %s40, %s43
    %p52 = scmp.eq.s32.totalorder %s14, 7
    %p53 = por %p51, %p52
    %p54 = scmp.ne.s32.totalorder %s43, %s44
    %p55 = scmp.eq.s32.totalorder %s14, 0
    %p56 = por %p54, %p55
    %p57 = scmp.ne.s32.totalorder %s43, %s44
    %p58 = scmp.eq.s32.totalorder %s15, 7
    %p59 = por %p57, %p58
    %p61 = scmp.ne.s32.totalorder %s44, %s60
    %p62 = scmp.eq.s32.totalorder %s15, 0
    %p63 = por %p61, %p62
    %s64 = ssub.s32 %s16, %s35
    %s65 = ssub.s32 %s18, %s27
    %s66 = sor.u32 %s64, %s65
    %p67 = scmp.eq.s32.totalorder %s66, 0
    %s69 = sadd.s32 %s68, 1
    %s70 = scalar_select %p67, %s68, %s69
    %p73 = pneg %p67
    %p74 = scmp.eq.s32.totalorder %s9, 7
    %p75 = por %p73, %p74
    %p76 = scmp.ne.s32.totalorder %s68, %s71
    %p77 = scmp.eq.s32.totalorder %s9, 0
    %p78 = por %p76, %p77
    %p79 = scmp.ne.s32.totalorder %s68, %s71
    %p80 = scmp.eq.s32.totalorder %s14, 7
    %p81 = por %p79, %p80
    %p82 = scmp.ne.s32.totalorder %s71, %s72
    %p83 = scmp.eq.s32.totalorder %s14, 0
    %p84 = por %p82, %p83
    %p85 = scmp.ne.s32.totalorder %s71, %s72
    %p86 = scmp.eq.s32.totalorder %s15, 7
    %p87 = por %p85, %p86
    %p89 = scmp.ne.s32.totalorder %s72, %s88
    %p90 = scmp.eq.s32.totalorder %s15, 0
    %p91 = por %p89, %p90
    %s92 = ssub.s32 %s16, %s35
    %s93 = ssub.s32 %s18, %s27
    %s94 = sor.u32 %s92, %s93
    %p95 = scmp.eq.s32.totalorder %s94, 0
    %s97 = sadd.s32 %s96, 1
    %s98 = scalar_select %p95, %s96, %s97
    %p101 = pneg %p95
    %p102 = scmp.eq.s32.totalorder %s9, 7
    %p103 = por %p101, %p102
    %p104 = scmp.ne.s32.totalorder %s96, %s99
    %p105 = scmp.eq.s32.totalorder %s9, 0
    %p106 = por %p104, %p105
    %p107 = scmp.ne.s32.totalorder %s96, %s99
    %p108 = scmp.eq.s32.totalorder %s14, 7
    %p109 = por %p107, %p108
    %p110 = scmp.ne.s32.totalorder %s99, %s100
    %p111 = scmp.eq.s32.totalorder %s14, 0
    %p112 = por %p110, %p111
    %p113 = scmp.ne.s32.totalorder %s99, %s100
    %p114 = scmp.eq.s32.totalorder %s15, 7
    %p115 = por %p113, %p114
    %p117 = scmp.ne.s32.totalorder %s100, %s116
    %p118 = scmp.eq.s32.totalorder %s15, 0
    %p119 = por %p117, %p118
    %s120 = ssub.s32 %s16, %s35
    %s121 = ssub.s32 %s17, %s31
    %s122 = sor.u32 %s120, %s121
    %p123 = scmp.eq.s32.totalorder %s122, 0
    %s125 = sadd.s32 %s124, 1
    %s126 = scalar_select %p123, %s124, %s125
    %p129 = pneg %p123
    %p130 = scmp.eq.s32.totalorder %s9, 7
    %p131 = por %p129, %p130
    %p132 = scmp.ne.s32.totalorder %s124, %s127
    %p133 = scmp.eq.s32.totalorder %s9, 0
    %p134 = por %p132, %p133
    %p135 = scmp.ne.s32.totalorder %s124, %s127
    %p136 = scmp.eq.s32.totalorder %s14, 7
    %p137 = por %p135, %p136
    %p138 = scmp.ne.s32.totalorder %s127, %s128
    %p139 = scmp.eq.s32.totalorder %s14, 0
    %p140 = por %p138, %p139
    %p141 = scmp.ne.s32.totalorder %s127, %s128
    %p142 = scmp.eq.s32.totalorder %s15, 7
    %p143 = por %p141, %p142
    %p145 = scmp.ne.s32.totalorder %s128, %s144
    %p146 = scmp.eq.s32.totalorder %s15, 0
    %p147 = por %p145, %p146
    %p148 = scmp.le.s32.totalorder 1, %s9
    %p149 = scmp.lt.s32.totalorder %s9, 9
    %p150 = pnand %p148, %p149
    %p151 = pneg %p150
    // Predicated region
    $region9: #{cross_attention.6} parent=5 // pred_check
      _
    $region10: #{cross_attention.6} parent=5 // pred_check_branch
      %153 = sbr.rel (%p150) target = $region12
    $region11: #{cross_attention.6} parent=5 // pred_region
      %s154 = ssub.s32 %s9, 1
    $region12: #{cross_attention.6} parent=5 // pred_fallthru
      _
    %p155 = scmp.lt.s32.totalorder %s9, 8
    // Predicated region
    $region13: #{cross_attention.6} parent=5 // pred_check
      %p156 = pneg %p155
    $region14: #{cross_attention.6} parent=5 // pred_check_branch
      %158 = sbr.rel (%p156) target = $region16
    $region15: #{cross_attention.6} parent=5 // pred_region
      // Predicated region
      $region17: #{cross_attention.6} parent=15 // pred_check
        %p159 = pneg %p50
      $region18: #{cross_attention.6} parent=15 // pred_check_branch
        %161 = sbr.rel (%p159) target = $region20
      $region19: #{cross_attention.6} parent=15 // pred_region
        %p162 = scmp.lt.s32.totalorder %s16, 7
        %s163 = scalar_select %p162, %s16, 7
        %p164 = scmp.lt.s32.totalorder %s17, 0
        %s165 = scalar_select %p164, %s17, 0
        %s166 = sadd.s32 %s165, %s163
        %s167 = smul.addr %s166, 8
        %s168 = scalar_lea.vmem %s0, %s167
      $region20: #{cross_attention.6} parent=15 // pred_fallthru
        _
      // Predicated region
      $region21: #{cross_attention.6} parent=15 // pred_check
        %p169 = pneg %p78
      $region22: #{cross_attention.6} parent=15 // pred_check_branch
        %171 = sbr.rel (%p169) target = $region24
      $region23: #{cross_attention.6} parent=15 // pred_region
        %s172 = smul.u32 2, %s18
        %p173 = scmp.lt.s32.totalorder %s16, 7
        %s174 = scalar_select %p173, %s16, 7
        %p175 = scmp.lt.s32.totalorder %s172, 1
        %s176 = scalar_select %p175, %s172, 1
        %s177 = smul.addr %s174, 2
        %s178 = sadd.s32 %s176, %s177
        %s179 = smul.addr %s178, 8
        %s180 = scalar_lea.vmem %s1, %s179
        %s181 = smul.u32 2, %s18
      $region24: #{cross_attention.6} parent=15 // pred_fallthru
        _
      // Predicated region
      $region25: #{cross_attention.6} parent=15 // pred_check
        %p182 = pneg %p106
      $region26: #{cross_attention.6} parent=15 // pred_check_branch
        %184 = sbr.rel (%p182) target = $region28
      $region27: #{cross_attention.6} parent=15 // pred_region
        %s185 = smul.u32 2, %s18
        %p186 = scmp.lt.s32.totalorder %s16, 7
        %s187 = scalar_select %p186, %s16, 7
        %p188 = scmp.lt.s32.totalorder %s185, 1
        %s189 = scalar_select %p188, %s185, 1
        %s190 = smul.addr %s187, 2
        %s191 = sadd.s32 %s189, %s190
        %s192 = smul.addr %s191, 8
        %s193 = scalar_lea.vmem %s2, %s192
        %s194 = smul.u32 2, %s18
      $region28: #{cross_attention.6} parent=15 // pred_fallthru
        _
    $region16: #{cross_attention.6} parent=5 // pred_fallthru
      _
    %p195 = scmp.le.s32.totalorder 1, %s9
    %p196 = scmp.lt.s32.totalorder %s9, 9
    %p197 = pnand %p195, %p196
    %p198 = pneg %p197
    // Predicated region
    $region29: #{cross_attention.6} parent=5 // pred_check
      _
    $region30: #{cross_attention.6} parent=5 // pred_check_branch
      %200 = sbr.rel (%p197) target = $region32
    $region31: #{cross_attention.6} parent=5 // pred_region
      %s201 = ssub.s32 %s9, 1
      %p202 = scmp.lt.s32.totalorder %s19, 7
      %s203 = scalar_select %p202, %s19, 7
      %p204 = scmp.lt.s32.totalorder %s20, 0
      %s205 = scalar_select %p204, %s20, 0
      %s206 = sadd.s32 %s205, %s203
      %s207 = smul.addr %s206, 8
      %s208 = scalar_lea.vmem %s0, %s207
      %p209 = pneg %p56
      %p210 = pneg %p53
      %s211 = smul.u32 2, %s21
      %p212 = scmp.lt.s32.totalorder %s19, 7
      %s213 = scalar_select %p212, %s19, 7
      %p214 = scmp.lt.s32.totalorder %s211, 1
      %s215 = scalar_select %p214, %s211, 1
      %s216 = smul.addr %s213, 2
      %s217 = sadd.s32 %s215, %s216
      %s218 = smul.addr %s217, 8
      %s219 = scalar_lea.vmem %s1, %s218
      %p220 = pneg %p84
      %p221 = pneg %p81
      %s222 = smul.u32 2, %s21
      %p223 = scmp.lt.s32.totalorder %s19, 7
      %s224 = scalar_select %p223, %s19, 7
      %p225 = scmp.lt.s32.totalorder %s222, 1
      %s226 = scalar_select %p225, %s222, 1
      %s227 = smul.addr %s224, 2
      %s228 = sadd.s32 %s226, %s227
      %s229 = smul.addr %s228, 8
      %s230 = scalar_lea.vmem %s2, %s229
      %p231 = pneg %p112
      %p232 = pneg %p109
      %p233 = pneg %p140
      %p234 = pneg %p137
      %p235 = scmp.lt.s32.totalorder %s19, 7
      %s236 = scalar_select %p235, %s19, 7
      %p237 = scmp.lt.s32.totalorder %s20, 0
      %s238 = scalar_select %p237, %s20, 0
      %s239 = sadd.s32 %s238, %s236
      %s240 = smul.addr %s239, 8
      %s241 = scalar_lea.vmem %s3, %s240
      %p242 = scmp.lt.s32.totalorder %s19, 7
      %s243 = scalar_select %p242, %s19, 7
      %p244 = scmp.lt.s32.totalorder %s20, 0
      %s245 = scalar_select %p244, %s20, 0
      %s246 = sadd.s32 %s245, %s243
      %s247 = smul.addr %s246, 8
      %s248 = scalar_lea.vmem %s0, %s247
      %s249 = smul.u32 2, %s21
      %p250 = scmp.lt.s32.totalorder %s19, 7
      %s251 = scalar_select %p250, %s19, 7
      %p252 = scmp.lt.s32.totalorder %s249, 1
      %s253 = scalar_select %p252, %s249, 1
      %s254 = smul.addr %s251, 2
      %s255 = sadd.s32 %s253, %s254
      %s256 = smul.addr %s255, 8
      %s257 = scalar_lea.vmem %s1, %s256
      %s258 = smul.u32 2, %s21
      %s259 = smul.u32 2, %s21
      %p260 = scmp.lt.s32.totalorder %s19, 7
      %s261 = scalar_select %p260, %s19, 7
      %p262 = scmp.lt.s32.totalorder %s259, 1
      %s263 = scalar_select %p262, %s259, 1
      %s264 = smul.addr %s261, 2
      %s265 = sadd.s32 %s263, %s264
      %s266 = smul.addr %s265, 8
      %s267 = scalar_lea.vmem %s2, %s266
      %s268 = smul.u32 2, %s21
      %p269 = scmp.lt.s32.totalorder %s19, 7
      %s270 = scalar_select %p269, %s19, 7
      %p271 = scmp.lt.s32.totalorder %s20, 0
      %s272 = scalar_select %p271, %s20, 0
      %s273 = sadd.s32 %s272, %s270
      %s274 = smul.addr %s273, 8
      %s275 = scalar_lea.vmem %s3, %s274
      %p276 = scmp.eq.s32.totalorder %s21, 0
      // Predicated region
      $region33: #{cross_attention.6} parent=31 // pred_check
        %p277 = pneg %p276
      $region34: #{cross_attention.6} parent=31 // pred_check_branch
        %279 = sbr.rel (%p277) target = $region36
      $region35: #{cross_attention.6} parent=31 // pred_region
        %vm280 = vcmask 7168
        %281 = vst.msk [vmem:[#allocation2] sm:$0xff] %vm280, -inf
        %282 = vst.msk [vmem:[#allocation3] sm:$0xff] %vm280, 0.0
        %vm283 = vcmask 64512
        %284 = vst.msk [vmem:[#allocation4] sm:$0xff] %vm283, 0.0
      $region36: #{cross_attention.6} parent=31 // pred_fallthru
        _
      %v285 = vld [vmem:[%s248] sm:$0xff]
      %v286 = vmul.f32 %v285, 0.35355338
      %v287 = vld [vmem:[%s257] sm:$0xff]
      %v288 = vld [vmem:[%s257 + $0x8] sm:$0xff]
      %v289 = vld [vmem:[%s267] sm:$0xff]
      %v290 = vld [vmem:[%s267 + $0x8] sm:$0xff]
      %vm291 = vcmask 64512
      %v293 = vsel %vm291, %v286, 0
      %v296 = vsel %vm291, %v287, 0
      %v299 = vsel %vm291, %v288, 0
      %301 = vmatprep.subr.mxu0 0.0
      %302 = vmatpush1.xpose.msra.mxu0 %v296
      %303 = vmatprep.subr.mxu0 0.0
      %304 = vmatpush1.xpose.msra.mxu0 %v299
      %305 = vmatprep.subr.mxu0 0.0
      %306 = vmatpush1.xpose.msra.mxu0 0.0
      %307 = vmatprep.subr.mxu0 0.0
      %308 = vmatpush1.xpose.msra.mxu0 0.0
      %309 = vmatprep.subr.mxu0 0.0
      %310 = vmatpush1.xpose.msra.mxu0 0.0
      %311 = vmatprep.subr.mxu0 0.0
      %312 = vmatpush1.xpose.msra.mxu0 0.0
      %313 = vmatprep.subr.mxu0 0.0
      %314 = vmatpush1.xpose.msra.mxu0 0.0
      %315 = vmatprep.subr.mxu0 0.0
      %316 = vmatpush1.xpose.msra.mxu0 0.0
      %317 = vmatprep.subr.mxu0 0.0
      %318 = vmatpush1.xpose.msra.mxu0 0.0
      %319 = vmatprep.subr.mxu0 0.0
      %320 = vmatpush1.xpose.msra.mxu0 0.0
      %321 = vmatprep.subr.mxu0 0.0
      %322 = vmatpush1.xpose.msra.mxu0 0.0
      %323 = vmatprep.subr.mxu0 0.0
      %324 = vmatpush1.xpose.msra.mxu0 0.0
      %325 = vmatprep.subr.mxu0 0.0
      %326 = vmatpush1.xpose.msra.mxu0 0.0
      %327 = vmatprep.subr.mxu0 0.0
      %328 = vmatpush1.xpose.msra.mxu0 0.0
      %329 = vmatprep.subr.mxu0 0.0
      %330 = vmatpush1.xpose.msra.mxu0 0.0
      %331 = vmatprep.subr.mxu0 0.0
      %332 = vmatpush1.xpose.msra.mxu0 0.0
      %333 = vmatprep.subr.mxu0 0.0
      %334 = vmatpush1.xpose.msra.mxu0 0.0
      %335 = vmatprep.subr.mxu0 0.0
      %336 = vmatpush1.xpose.msra.mxu0 0.0
      %337 = vmatprep.subr.mxu0 0.0
      %338 = vmatpush1.xpose.msra.mxu0 0.0
      %339 = vmatprep.subr.mxu0 0.0
      %340 = vmatpush1.xpose.msra.mxu0 0.0
      %341 = vmatprep.subr.mxu0 0.0
      %342 = vmatpush1.xpose.msra.mxu0 0.0
      %343 = vmatprep.subr.mxu0 0.0
      %344 = vmatpush1.xpose.msra.mxu0 0.0
      %345 = vmatprep.subr.mxu0 0.0
      %346 = vmatpush1.xpose.msra.mxu0 0.0
      %347 = vmatprep.subr.mxu0 0.0
      %348 = vmatpush1.xpose.msra.mxu0 0.0
      %349 = vmatprep.subr.mxu0 0.0
      %350 = vmatpush1.xpose.msra.mxu0 0.0
      %351 = vmatprep.subr.mxu0 0.0
      %352 = vmatpush1.xpose.msra.mxu0 0.0
      %353 = vmatprep.subr.mxu0 0.0
      %354 = vmatpush1.xpose.msra.mxu0 0.0
      %355 = vmatprep.subr.mxu0 0.0
      %356 = vmatpush1.xpose.msra.mxu0 0.0
      %357 = vmatprep.subr.mxu0 0.0
      %358 = vmatpush1.xpose.msra.mxu0 0.0
      %359 = vmatprep.subr.mxu0 0.0
      %360 = vmatpush1.xpose.msra.mxu0 0.0
      %361 = vmatprep.subr.mxu0 0.0
      %362 = vmatpush1.xpose.msra.mxu0 0.0
      %363 = vmatprep.subr.mxu0 0.0
      %364 = vmatpush1.xpose.msra.mxu0 0.0
      %365 = vmatprep.mubr.f32.mxu0 0.0
      %366 = vmatmul.mubr.f32.gmra.mrb[0].mxu0 %v293
      %v367 = vpop.f32.mrb[0].mxu0
      %v368 = vadd.f32 0.0, %v367
      %v369 = vpop.f32.mrb[0].mxu0
      %370 = vdwg.mxu0
      %v371 = vld [vmem:[#allocation2] sm:$0xff]
      %vm372 = vcmask 130048
      %v373 = vsel %vm372, %v368, -inf
      %374 = vmax.xlane.f32.xlu0 %v373
      %v375 = vpop.xlane.xlu0 %374
      %v376 = vmax.f32 %v371, %v375
      %v377 = vsub.f32 %v371, %v376
      %v378 = vmul.f32 %v377, 1.442695
      %v379 = vpow.pop %v378
      %381 = vset.pattern.permute.xlu0 0
      %382 = vperm.xlu0 %381, %v376
      %v383 = vpop.permute.xlu0 %382
      %v385 = vsub.f32 %v368, %v383
      %v386 = vmul.f32 %v385, 1.442695
      %v387 = vpow.pop %v386
      %v388 = vld [vmem:[#allocation3] sm:$0xff]
      %v389 = vmul.f32 %v379, %v388
      %v390 = vsel %vm372, %v387, 0.0
      %391 = vadd.xlane.f32.xlu0 %v390
      %v392 = vpop.xlane.xlu0 %391
      %v393 = vadd.f32 %v389, %v392
      %vm394 = vcmask 7168
      %395 = vst.msk [vmem:[#allocation3] sm:$0xff] %vm394, %v393
      %v396 = vld [vmem:[#allocation4] sm:$0xff]
      %398 = vset.pattern.permute.xlu0 0
      %399 = vperm.xlu0 %398, %v379
      %v400 = vpop.permute.xlu0 %399
      %v402 = vmul.f32 %v400, %v396
      %v404 = vsel %vm372, %v387, 0
      %406 = vmatprep.subr.mxu0 0.0
      %407 = vmatpush1.msra.mxu0 %v289
      %408 = vmatprep.subr.mxu0 0.0
      %409 = vmatpush1.msra.mxu0 %v290
      %410 = vmatprep.subr.mxu0 0.0
      %411 = vmatpush1.msra.mxu0 0.0
      %412 = vmatprep.subr.mxu0 0.0
      %413 = vmatpush1.msra.mxu0 0.0
      %414 = vmatprep.subr.mxu0 0.0
      %415 = vmatpush1.msra.mxu0 0.0
      %416 = vmatprep.subr.mxu0 0.0
      %417 = vmatpush1.msra.mxu0 0.0
      %418 = vmatprep.subr.mxu0 0.0
      %419 = vmatpush1.msra.mxu0 0.0
      %420 = vmatprep.subr.mxu0 0.0
      %421 = vmatpush1.msra.mxu0 0.0
      %422 = vmatprep.subr.mxu0 0.0
      %423 = vmatpush1.msra.mxu0 0.0
      %424 = vmatprep.subr.mxu0 0.0
      %425 = vmatpush1.msra.mxu0 0.0
      %426 = vmatprep.subr.mxu0 0.0
      %427 = vmatpush1.msra.mxu0 0.0
      %428 = vmatprep.subr.mxu0 0.0
      %429 = vmatpush1.msra.mxu0 0.0
      %430 = vmatprep.subr.mxu0 0.0
      %431 = vmatpush1.msra.mxu0 0.0
      %432 = vmatprep.subr.mxu0 0.0
      %433 = vmatpush1.msra.mxu0 0.0
      %434 = vmatprep.subr.mxu0 0.0
      %435 = vmatpush1.msra.mxu0 0.0
      %436 = vmatprep.subr.mxu0 0.0
      %437 = vmatpush1.msra.mxu0 0.0
      %438 = vmatprep.subr.mxu0 0.0
      %439 = vmatpush1.msra.mxu0 0.0
      %440 = vmatprep.subr.mxu0 0.0
      %441 = vmatpush1.msra.mxu0 0.0
      %442 = vmatprep.subr.mxu0 0.0
      %443 = vmatpush1.msra.mxu0 0.0
      %444 = vmatprep.subr.mxu0 0.0
      %445 = vmatpush1.msra.mxu0 0.0
      %446 = vmatprep.subr.mxu0 0.0
      %447 = vmatpush1.msra.mxu0 0.0
      %448 = vmatprep.subr.mxu0 0.0
      %449 = vmatpush1.msra.mxu0 0.0
      %450 = vmatprep.subr.mxu0 0.0
      %451 = vmatpush1.msra.mxu0 0.0
      %452 = vmatprep.subr.mxu0 0.0
      %453 = vmatpush1.msra.mxu0 0.0
      %454 = vmatprep.subr.mxu0 0.0
      %455 = vmatpush1.msra.mxu0 0.0
      %456 = vmatprep.subr.mxu0 0.0
      %457 = vmatpush1.msra.mxu0 0.0
      %458 = vmatprep.subr.mxu0 0.0
      %459 = vmatpush1.msra.mxu0 0.0
      %460 = vmatprep.subr.mxu0 0.0
      %461 = vmatpush1.msra.mxu0 0.0
      %462 = vmatprep.subr.mxu0 0.0
      %463 = vmatpush1.msra.mxu0 0.0
      %464 = vmatprep.subr.mxu0 0.0
      %465 = vmatpush1.msra.mxu0 0.0
      %466 = vmatprep.subr.mxu0 0.0
      %467 = vmatpush1.msra.mxu0 0.0
      %468 = vmatprep.subr.mxu0 0.0
      %469 = vmatpush1.msra.mxu0 0.0
      %470 = vmatprep.mubr.f32.mxu0 0.0
      %471 = vmatmul.mubr.f32.gmra.mrb[0].mxu0 %v404
      %v472 = vpop.f32.mrb[0].mxu0
      %v473 = vadd.f32 0.0, %v472
      %v474 = vpop.f32.mrb[0].mxu0
      %475 = vdwg.mxu0
      %v476 = vadd.f32 %v402, %v473
      %477 = vst.msk [vmem:[#allocation4] sm:$0xff] %vm291, %v476
      %478 = vst.msk [vmem:[#allocation2] sm:$0xff] %vm394, %v376
      // Predicated region
      $region37: #{cross_attention.6} parent=31 // pred_check
        %p479 = pneg %p276
      $region38: #{cross_attention.6} parent=31 // pred_check_branch
        %481 = sbr.rel (%p479) target = $region40
      $region39: #{cross_attention.6} parent=31 // pred_region
        %v482 = vld [vmem:[#allocation3] sm:$0xff]
        %v483 = vrcp.pop %v482
        %v484 = vmul.f32 %v482, %v483
        %v485 = vsub.f32 2.0, %v484
        %v486 = vmul.f32 %v483, %v485
        %v487 = vld [vmem:[#allocation4] sm:$0xff]
        %489 = vset.pattern.permute.xlu0 0
        %490 = vperm.xlu0 %489, %v486
        %v491 = vpop.permute.xlu0 %490
        %v493 = vmul.f32 %v487, %v491
        %494 = vst.msk [vmem:[%s275] sm:$0xff] %vm291, %v493
      $region40: #{cross_attention.6} parent=31 // pred_fallthru
        _
      %p495 = scmp.lt.s32.totalorder %s19, 7
      %s496 = scalar_select %p495, %s19, 7
      %p497 = scmp.lt.s32.totalorder %s20, 0
      %s498 = scalar_select %p497, %s20, 0
      %s499 = sadd.s32 %s498, %s496
      %s500 = smul.addr %s499, 8
      %s501 = scalar_lea.vmem %s3, %s500
      // Predicated region
      $region41: #{cross_attention.6} parent=31 // pred_check
        %p502 = pneg %p137
      $region42: #{cross_attention.6} parent=31 // pred_check_branch
        %504 = sbr.rel (%p502) target = $region44
      $region43: #{cross_attention.6} parent=31 // pred_region
        _
      $region44: #{cross_attention.6} parent=31 // pred_fallthru
        _
    $region32: #{cross_attention.6} parent=5 // pred_fallthru
      _
    %p505 = scmp.le.s32.totalorder 2, %s9
    // Predicated region
    $region45: #{cross_attention.6} parent=5 // pred_check
      %p506 = pneg %p505
    $region46: #{cross_attention.6} parent=5 // pred_check_branch
      %508 = sbr.rel (%p506) target = $region48
    $region47: #{cross_attention.6} parent=5 // pred_region
      %s509 = ssub.s32 %s9, 2
      // Predicated region
      $region49: #{cross_attention.6} parent=47 // pred_check
        %p510 = pneg %p143
      $region50: #{cross_attention.6} parent=47 // pred_check_branch
        %512 = sbr.rel (%p510) target = $region52
      $region51: #{cross_attention.6} parent=47 // pred_region
        %p513 = scmp.lt.s32.totalorder %s22, 7
        %s514 = scalar_select %p513, %s22, 7
        %p515 = scmp.lt.s32.totalorder %s23, 0
        %s516 = scalar_select %p515, %s23, 0
        %s517 = sadd.s32 %s516, %s514
        %s518 = smul.addr %s517, 8
        %s519 = scalar_lea.vmem %s3, %s518
      $region52: #{cross_attention.6} parent=47 // pred_fallthru
        _
    $region48: #{cross_attention.6} parent=5 // pred_fallthru
      _
  $region6: #{cross_attention.6} parent=0 // loop_footer
    %s13 = sadd.s32 1, %s9
  $region7: #{cross_attention.6} parent=0 // loop_footer_branch
    %8 = sbr.rel target = $region3
  $region8: #{cross_attention.6} parent=0 // loop_exit
    _

</llo_original>
